<compile_context>
chip_gen: v7x
topology: tpu7x:2x2x1
jax: 0.10.0
libtpu: 0.0.40
codegen_flags: <defaults>
</compile_context>

<pallas_src>
import functools

import jax
import jax.numpy as jnp
from jax import lax
from jax.experimental import pallas as pl
from jax.experimental.pallas import tpu as pltpu

EPS = 1e-5


def bn_relu_kernel(x_ref, gamma_ref, beta_ref, o_ref, *, inv_count):
    # x_ref:     (N, BC, HW)
    # gamma_ref: (1, BC, 1)
    # beta_ref:  (1, BC, 1)
    # o_ref:     (N, BC, HW)
    x = x_ref[...]
    xf = x.astype(jnp.float32)  # stats always in f32 (no-op for f32 inputs)

    # Two-pass statistics: exact XLU sums (no MXU bf16 rounding), and
    # subtract-mean-then-square avoids catastrophic cancellation.
    s = jnp.sum(xf, axis=-1, keepdims=True)          # (N, BC, 1)
    s = jnp.sum(s, axis=0, keepdims=True)            # (1, BC, 1)
    mean = s * inv_count

    xm = xf - mean
    ss = jnp.sum(xm * xm, axis=-1, keepdims=True)    # (N, BC, 1)
    ss = jnp.sum(ss, axis=0, keepdims=True)          # (1, BC, 1)
    var = ss * inv_count                              # biased variance (PyTorch BN)
    inv_std = lax.rsqrt(var + EPS)

    scale = gamma_ref[...] * inv_std                  # (1, BC, 1), f32

    if x.dtype == jnp.float32:
        y = xm * scale + beta_ref[...]
    else:
        # Elementwise path in the input dtype (bf16 VALU on v6e/v7x) to halve
        # vreg/VMEM pressure; scale/shift stay f32-derived.
        shift = beta_ref[...] - mean * scale
        y = x * scale.astype(x.dtype) + shift.astype(x.dtype)

    o_ref[...] = jnp.maximum(y, 0).astype(o_ref.dtype)  # fused ReLU


def _pick_block_c(C, bytes_per_channel, vmem_budget=2 << 20):
    """Largest channel-block divisor of C fitting the budget; prefer grid >= 2."""
    divisors = [d for d in range(1, C + 1) if C % d == 0]
    fitting = [
        d for d in divisors
        if d * bytes_per_channel <= vmem_budget and (d % 8 == 0 or d == C)
    ]
    if not fitting:
        # TODO(synk): if a single channel's row (N*HW) exceeds the VMEM budget,
        # chunk the reduction length with an "arbitrary" grid axis instead of
        # keeping the whole row resident.
        fitting = [min(divisors)]
    two_step = [d for d in fitting if C // d >= 2]  # keep both v7x TCs busy
    return max(two_step) if two_step else max(fitting)


def batchnorm_relu(x_nchw, gamma, beta):
    """x_nchw: (N, C, H, W). gamma/beta: (C,). Returns (N, C, H, W)."""
    N, C, H, W = x_nchw.shape
    HW = H * W

    # Free relayout: (N, C, H, W) -> (N, C, H*W) keeps memory order, so no
    # HBM transpose/pad is ever materialized (works for any N).
    x_ncl = x_nchw.reshape(N, C, HW)

    gamma3 = gamma.reshape(1, C, 1).astype(jnp.float32)
    beta3 = beta.reshape(1, C, 1).astype(jnp.float32)

    bytes_per_channel = N * HW * jnp.dtype(x_nchw.dtype).itemsize
    BC = _pick_block_c(C, bytes_per_channel)
    kernel = functools.partial(bn_relu_kernel, inv_count=1.0 / (N * HW))

    out = pl.pallas_call(
        kernel,
        out_shape=jax.ShapeDtypeStruct((N, C, HW), x_nchw.dtype),
        grid=(C // BC,),
        in_specs=[
            pl.BlockSpec((N, BC, HW), lambda i: (0, i, 0)),  # x slab
            pl.BlockSpec((1, BC, 1), lambda i: (0, i, 0)),   # gamma tile
            pl.BlockSpec((1, BC, 1), lambda i: (0, i, 0)),   # beta tile
        ],
        out_specs=pl.BlockSpec((N, BC, HW), lambda i: (0, i, 0)),
        compiler_params=pltpu.CompilerParams(
            dimension_semantics=("parallel",),  # channel blocks are independent
        ),
    )(x_ncl, gamma3, beta3)

    return out.reshape(N, C, H, W)


def _reference(x_nchw, gamma, beta):
    mean = jnp.mean(x_nchw, axis=(0, 2, 3), keepdims=True)
    var = jnp.mean((x_nchw - mean) ** 2, axis=(0, 2, 3), keepdims=True)
    y = (x_nchw - mean) * lax.rsqrt(var + EPS)
    y = y * gamma.reshape(1, -1, 1, 1) + beta.reshape(1, -1, 1, 1)
    return jnp.maximum(y, 0.0)


if __name__ == "__main__":
    key = jax.random.PRNGKey(0)
    kx, kg, kb = jax.random.split(key, 3)

    N, C, H, W = 1, 256, 28, 28  # matches x153 = randn([1, 256, 28, 28])
    x = jax.random.normal(kx, (N, C, H, W), dtype=jnp.float32)
    # Deterministic non-trivial affine parameters for BatchNorm2d(256).
    gamma = 1.0 + 0.1 * jax.random.normal(kg, (C,), dtype=jnp.float32)
    beta = 0.1 * jax.random.normal(kb, (C,), dtype=jnp.float32)

    out = jax.block_until_ready(batchnorm_relu(x, gamma, beta))

    ref = _reference(x, gamma, beta)
    assert out.shape == (N, C, H, W)
    assert jnp.allclose(out, ref, atol=1e-4, rtol=1e-4)

    print("KERNEL_OK")
</pallas_src>

<mosaic_0001>
module attributes {stable_mosaic.version = 11 : i64} {
  func.func @bn_relu_kernel(%arg0: i32, %arg1: memref<1x128x784xf32, #tpu.memory_space<vmem>>, %arg2: memref<1x128x1xf32, #tpu.memory_space<vmem>>, %arg3: memref<1x128x1xf32, #tpu.memory_space<vmem>>, %arg4: memref<1x128x784xf32, #tpu.memory_space<vmem>>) attributes {dimension_semantics = [#tpu.dimension_semantics<parallel>], iteration_bounds = array<i64: 2>, scalar_prefetch = 0 : i64, scratch_operands = 0 : i64, tpu.core_type = #tpu.core_type<tc>, window_params = [{transform_indices = @transform_0, window_bounds = array<i64: 1, 128, 784>}, {transform_indices = @transform_1, window_bounds = array<i64: 1, 128, 1>}, {transform_indices = @transform_2, window_bounds = array<i64: 1, 128, 1>}, {transform_indices = @transform_3, window_bounds = array<i64: 1, 128, 784>}]} {
    %c0 = arith.constant 0 : index
    %c0_0 = arith.constant 0 : index
    %c0_1 = arith.constant 0 : index
    %0 = vector.load %arg1[%c0, %c0_0, %c0_1] : memref<1x128x784xf32, #tpu.memory_space<vmem>>, vector<1x128x784xf32>
    %cst = arith.constant dense<0.000000e+00> : vector<1x128xf32>
    %1 = vector.multi_reduction <add>, %0, %cst [2] : vector<1x128x784xf32> to vector<1x128xf32>
    %2 = vector.shape_cast %1 : vector<1x128xf32> to vector<1x128x1xf32>
    %cst_2 = arith.constant dense<0.000000e+00> : vector<128x1xf32>
    %3 = vector.multi_reduction <add>, %2, %cst_2 [0] : vector<1x128x1xf32> to vector<128x1xf32>
    %4 = vector.shape_cast %3 : vector<128x1xf32> to vector<1x128x1xf32>
    %cst_3 = arith.constant 0.00127551018 : f32
    %5 = vector.broadcast %cst_3 : f32 to vector<1x128x1xf32>
    %6 = arith.mulf %4, %5 : vector<1x128x1xf32>
    %7 = vector.broadcast %6 : vector<1x128x1xf32> to vector<1x128x784xf32>
    %8 = arith.subf %0, %7 : vector<1x128x784xf32>
    %9 = arith.mulf %8, %8 : vector<1x128x784xf32>
    %cst_4 = arith.constant dense<0.000000e+00> : vector<1x128xf32>
    %10 = vector.multi_reduction <add>, %9, %cst_4 [2] : vector<1x128x784xf32> to vector<1x128xf32>
    %11 = vector.shape_cast %10 : vector<1x128xf32> to vector<1x128x1xf32>
    %cst_5 = arith.constant dense<0.000000e+00> : vector<128x1xf32>
    %12 = vector.multi_reduction <add>, %11, %cst_5 [0] : vector<1x128x1xf32> to vector<128x1xf32>
    %13 = vector.shape_cast %12 : vector<128x1xf32> to vector<1x128x1xf32>
    %cst_6 = arith.constant 0.00127551018 : f32
    %14 = vector.broadcast %cst_6 : f32 to vector<1x128x1xf32>
    %15 = arith.mulf %13, %14 : vector<1x128x1xf32>
    %cst_7 = arith.constant 9.99999974E-6 : f32
    %16 = vector.broadcast %cst_7 : f32 to vector<1x128x1xf32>
    %17 = arith.addf %15, %16 : vector<1x128x1xf32>
    %18 = math.rsqrt %17 : vector<1x128x1xf32>
    %c0_8 = arith.constant 0 : index
    %c0_9 = arith.constant 0 : index
    %c0_10 = arith.constant 0 : index
    %19 = vector.load %arg2[%c0_8, %c0_9, %c0_10] : memref<1x128x1xf32, #tpu.memory_space<vmem>>, vector<1x128x1xf32>
    %20 = arith.mulf %19, %18 : vector<1x128x1xf32>
    %21 = vector.broadcast %20 : vector<1x128x1xf32> to vector<1x128x784xf32>
    %22 = arith.mulf %8, %21 : vector<1x128x784xf32>
    %c0_11 = arith.constant 0 : index
    %c0_12 = arith.constant 0 : index
    %c0_13 = arith.constant 0 : index
    %23 = vector.load %arg3[%c0_11, %c0_12, %c0_13] : memref<1x128x1xf32, #tpu.memory_space<vmem>>, vector<1x128x1xf32>
    %24 = vector.broadcast %23 : vector<1x128x1xf32> to vector<1x128x784xf32>
    %25 = arith.addf %22, %24 : vector<1x128x784xf32>
    %cst_14 = arith.constant 0.000000e+00 : f32
    %26 = vector.broadcast %cst_14 : f32 to vector<1x128x784xf32>
    %27 = arith.maximumf %25, %26 : vector<1x128x784xf32>
    %c0_15 = arith.constant 0 : index
    %c0_16 = arith.constant 0 : index
    %c0_17 = arith.constant 0 : index
    %28 = vector.load %arg4[%c0_15, %c0_16, %c0_17] : memref<1x128x784xf32, #tpu.memory_space<vmem>>, vector<1x128x784xf32>
    tpu.vector_store %arg4[%c0_15, %c0_16, %c0_17], %27 {strides = array<i32>} : memref<1x128x784xf32, #tpu.memory_space<vmem>>, vector<1x128x784xf32>,
    return
  }
  func.func @transform_0(%arg0: i32) -> (i32, i32, i32) {
    %c0_i32 = arith.constant 0 : i32
    %c0_i32_0 = arith.constant 0 : i32
    %c0_i32_1 = arith.constant 0 : i32
    return %c0_i32, %arg0, %c0_i32_0 : i32, i32, i32
  }
  func.func @transform_1(%arg0: i32) -> (i32, i32, i32) {
    %c0_i32 = arith.constant 0 : i32
    %c0_i32_0 = arith.constant 0 : i32
    %c0_i32_1 = arith.constant 0 : i32
    return %c0_i32, %arg0, %c0_i32_0 : i32, i32, i32
  }
  func.func @transform_2(%arg0: i32) -> (i32, i32, i32) {
    %c0_i32 = arith.constant 0 : i32
    %c0_i32_0 = arith.constant 0 : i32
    %c0_i32_1 = arith.constant 0 : i32
    return %c0_i32, %arg0, %c0_i32_0 : i32, i32, i32
  }
  func.func @transform_3(%arg0: i32) -> (i32, i32, i32) {
    %c0_i32 = arith.constant 0 : i32
    %c0_i32_0 = arith.constant 0 : i32
    %c0_i32_1 = arith.constant 0 : i32
    return %c0_i32, %arg0, %c0_i32_0 : i32, i32, i32
  }
}

</mosaic_0001>

<llo_original>
// kernel: tpu_custom_call.1
$region0: #{tpu_custom_call.1}
  #allocation0 [shape = 'u32[]', space=smem, size = 0x4, offset = 0x4, fixed_abs, tag = 'smem constant byte address 0x4 - core index']
  #allocation1 [shape = 'u32[144,128]{1,0:T(1,128)}', space=vmem, size = 0x12000, scoped, tag = 'internal scratch']
  %s0 = inlined_call_operand.vmem [shape: f32[1,256,784], index: 0, kind: input, shape index: {}]
  %s1 = inlined_call_operand.vmem [shape: f32[1,256,1], index: 1, kind: input, shape index: {}]
  %s2 = inlined_call_operand.vmem [shape: f32[1,256,1], index: 2, kind: input, shape index: {}]
  %s3 = inlined_call_operand.vmem [shape: f32[1,256,784], index: 3, kind: output, shape index: {}]
  %s4 = sld [smem:[#allocation0]]
  $region45: #{tpu_custom_call.1} parent=0
    _
  %s6 = ssub.s32 1, %s4
  %s7 = scalar_select 0, %s6, %s4
  loop: start=0, step=1, limit=4
  $region2: #{tpu_custom_call.1} parent=0 // loop_pre_header
    _
  $region3: #{tpu_custom_call.1} parent=0 // loop_header
    %s9 = sphi 0, %s13
    %p10 = scmp.ge.s32.totalorder %s9, 4
    %s19 = sphi 0, %s21
    %s22 = sphi 0, %s19
    %s23 = sphi 0, %s22
    %s39 = sphi 0, %s23
    %s45 = sphi 0, %s47
    %s48 = sphi 0, %s45
    %s49 = sphi 0, %s48
    %s65 = sphi 0, %s49
    %s71 = sphi 0, %s73
    %s74 = sphi 0, %s71
    %s75 = sphi 0, %s74
    %s91 = sphi 0, %s75
    %s97 = sphi 0, %s99
    %s100 = sphi 0, %s97
    %s101 = sphi 0, %s100
    %s117 = sphi 0, %s101
  $region4: #{tpu_custom_call.1} parent=0 // loop_header_branch
    %12 = sbr.rel (%p10) target = $region8
  $region5: #{tpu_custom_call.1} parent=0 // loop_body
    %s14 = ssub.s32 %s9, 1
    %s15 = ssub.s32 %s9, 2
    %s16 = sadd.s32 %s9, 1
    %s17 = ssub.s32 %s9, %s16
    %p18 = scmp.eq.s32.totalorder %s17, 0
    %s20 = sadd.s32 %s19, 1
    %s21 = scalar_select %p18, %s19, %s20
    %p24 = pneg %p18
    %p25 = scmp.eq.s32.totalorder %s9, 1
    %p26 = por %p24, %p25
    %p27 = scmp.ne.s32.totalorder %s19, %s22
    %p28 = scmp.eq.s32.totalorder %s9, 0
    %p29 = por %p27, %p28
    %p30 = scmp.ne.s32.totalorder %s19, %s22
    %p31 = scmp.eq.s32.totalorder %s14, 1
    %p32 = por %p30, %p31
    %p33 = scmp.ne.s32.totalorder %s22, %s23
    %p34 = scmp.eq.s32.totalorder %s14, 0
    %p35 = por %p33, %p34
    %p36 = scmp.ne.s32.totalorder %s22, %s23
    %p37 = scmp.eq.s32.totalorder %s15, 1
    %p38 = por %p36, %p37
    %p40 = scmp.ne.s32.totalorder %s23, %s39
    %p41 = scmp.eq.s32.totalorder %s15, 0
    %p42 = por %p40, %p41
    %s43 = ssub.s32 %s9, %s16
    %p44 = scmp.eq.s32.totalorder %s43, 0
    %s46 = sadd.s32 %s45, 1
    %s47 = scalar_select %p44, %s45, %s46
    %p50 = pneg %p44
    %p51 = scmp.eq.s32.totalorder %s9, 1
    %p52 = por %p50, %p51
    %p53 = scmp.ne.s32.totalorder %s45, %s48
    %p54 = scmp.eq.s32.totalorder %s9, 0
    %p55 = por %p53, %p54
    %p56 = scmp.ne.s32.totalorder %s45, %s48
    %p57 = scmp.eq.s32.totalorder %s14, 1
    %p58 = por %p56, %p57
    %p59 = scmp.ne.s32.totalorder %s48, %s49
    %p60 = scmp.eq.s32.totalorder %s14, 0
    %p61 = por %p59, %p60
    %p62 = scmp.ne.s32.totalorder %s48, %s49
    %p63 = scmp.eq.s32.totalorder %s15, 1
    %p64 = por %p62, %p63
    %p66 = scmp.ne.s32.totalorder %s49, %s65
    %p67 = scmp.eq.s32.totalorder %s15, 0
    %p68 = por %p66, %p67
    %s69 = ssub.s32 %s9, %s16
    %p70 = scmp.eq.s32.totalorder %s69, 0
    %s72 = sadd.s32 %s71, 1
    %s73 = scalar_select %p70, %s71, %s72
    %p76 = pneg %p70
    %p77 = scmp.eq.s32.totalorder %s9, 1
    %p78 = por %p76, %p77
    %p79 = scmp.ne.s32.totalorder %s71, %s74
    %p80 = scmp.eq.s32.totalorder %s9, 0
    %p81 = por %p79, %p80
    %p82 = scmp.ne.s32.totalorder %s71, %s74
    %p83 = scmp.eq.s32.totalorder %s14, 1
    %p84 = por %p82, %p83
    %p85 = scmp.ne.s32.totalorder %s74, %s75
    %p86 = scmp.eq.s32.totalorder %s14, 0
    %p87 = por %p85, %p86
    %p88 = scmp.ne.s32.totalorder %s74, %s75
    %p89 = scmp.eq.s32.totalorder %s15, 1
    %p90 = por %p88, %p89
    %p92 = scmp.ne.s32.totalorder %s75, %s91
    %p93 = scmp.eq.s32.totalorder %s15, 0
    %p94 = por %p92, %p93
    %s95 = ssub.s32 %s9, %s16
    %p96 = scmp.eq.s32.totalorder %s95, 0
    %s98 = sadd.s32 %s97, 1
    %s99 = scalar_select %p96, %s97, %s98
    %p102 = pneg %p96
    %p103 = scmp.eq.s32.totalorder %s9, 1
    %p104 = por %p102, %p103
    %p105 = scmp.ne.s32.totalorder %s97, %s100
    %p106 = scmp.eq.s32.totalorder %s9, 0
    %p107 = por %p105, %p106
    %p108 = scmp.ne.s32.totalorder %s97, %s100
    %p109 = scmp.eq.s32.totalorder %s14, 1
    %p110 = por %p108, %p109
    %p111 = scmp.ne.s32.totalorder %s100, %s101
    %p112 = scmp.eq.s32.totalorder %s14, 0
    %p113 = por %p111, %p112
    %p114 = scmp.ne.s32.totalorder %s100, %s101
    %p115 = scmp.eq.s32.totalorder %s15, 1
    %p116 = por %p114, %p115
    %p118 = scmp.ne.s32.totalorder %s101, %s117
    %p119 = scmp.eq.s32.totalorder %s15, 0
    %p120 = por %p118, %p119
    %p121 = scmp.le.s32.totalorder 1, %s9
    %p122 = scmp.lt.s32.totalorder %s9, 3
    %p123 = pnand %p121, %p122
    %p124 = pneg %p123
    // Predicated region
    $region9: #{tpu_custom_call.1} parent=5 // pred_check
      _
    $region10: #{tpu_custom_call.1} parent=5 // pred_check_branch
      %126 = sbr.rel (%p123) target = $region12
    $region11: #{tpu_custom_call.1} parent=5 // pred_region
      %s127 = ssub.s32 %s9, 1
    $region12: #{tpu_custom_call.1} parent=5 // pred_fallthru
      _
    %p128 = scmp.lt.s32.totalorder %s9, 2
    // Predicated region
    $region13: #{tpu_custom_call.1} parent=5 // pred_check
      %p129 = pneg %p128
    $region14: #{tpu_custom_call.1} parent=5 // pred_check_branch
      %131 = sbr.rel (%p129) target = $region16
    $region15: #{tpu_custom_call.1} parent=5 // pred_region
      // Predicated region
      $region17: #{tpu_custom_call.1} parent=15 // pred_check
        %p132 = pneg %p29
      $region18: #{tpu_custom_call.1} parent=15 // pred_check_branch
        %134 = sbr.rel (%p132) target = $region20
      $region19: #{tpu_custom_call.1} parent=15 // pred_region
        %s135 = smul.u32 16, %s9
        %p136 = scmp.lt.s32.totalorder %s135, 31
        %s137 = scalar_select %p136, %s135, 31
        %s138 = smul.addr %s137, 7
        %s139 = smul.addr %s138, 8
        %s140 = scalar_lea.vmem %s0, %s139
        %s141 = smul.u32 16, %s9
      $region20: #{tpu_custom_call.1} parent=15 // pred_fallthru
        _
      // Predicated region
      $region21: #{tpu_custom_call.1} parent=15 // pred_check
        %p142 = pneg %p55
      $region22: #{tpu_custom_call.1} parent=15 // pred_check_branch
        %144 = sbr.rel (%p142) target = $region24
      $region23: #{tpu_custom_call.1} parent=15 // pred_region
        %s145 = smul.u32 16, %s9
        %p146 = scmp.lt.s32.totalorder %s145, 31
        %s147 = scalar_select %p146, %s145, 31
        %s148 = smul.addr %s147, 8
        %s149 = scalar_lea.vmem %s1, %s148
        %s150 = smul.u32 16, %s9
      $region24: #{tpu_custom_call.1} parent=15 // pred_fallthru
        _
      // Predicated region
      $region25: #{tpu_custom_call.1} parent=15 // pred_check
        %p151 = pneg %p81
      $region26: #{tpu_custom_call.1} parent=15 // pred_check_branch
        %153 = sbr.rel (%p151) target = $region28
      $region27: #{tpu_custom_call.1} parent=15 // pred_region
        %s154 = smul.u32 16, %s9
        %p155 = scmp.lt.s32.totalorder %s154, 31
        %s156 = scalar_select %p155, %s154, 31
        %s157 = smul.addr %s156, 8
        %s158 = scalar_lea.vmem %s2, %s157
        %s159 = smul.u32 16, %s9
      $region28: #{tpu_custom_call.1} parent=15 // pred_fallthru
        _
    $region16: #{tpu_custom_call.1} parent=5 // pred_fallthru
      _
    %p160 = scmp.le.s32.totalorder 1, %s9
    %p161 = scmp.lt.s32.totalorder %s9, 3
    %p162 = pnand %p160, %p161
    %p163 = pneg %p162
    // Predicated region
    $region29: #{tpu_custom_call.1} parent=5 // pred_check
      _
    $region30: #{tpu_custom_call.1} parent=5 // pred_check_branch
      %165 = sbr.rel (%p162) target = $region32
    $region31: #{tpu_custom_call.1} parent=5 // pred_region
      %s166 = ssub.s32 %s9, 1
      %s167 = smul.u32 16, %s14
      %p168 = scmp.lt.s32.totalorder %s167, 31
      %s169 = scalar_select %p168, %s167, 31
      %s170 = smul.addr %s169, 7
      %s171 = smul.addr %s170, 8
      %s172 = scalar_lea.vmem %s0, %s171
      %p173 = pneg %p35
      %p174 = pneg %p32
      %s175 = smul.u32 16, %s14
      %p176 = scmp.lt.s32.totalorder %s175, 31
      %s177 = scalar_select %p176, %s175, 31
      %s178 = smul.addr %s177, 8
      %s179 = scalar_lea.vmem %s1, %s178
      %p180 = pneg %p61
      %p181 = pneg %p58
      %s182 = smul.u32 16, %s14
      %p183 = scmp.lt.s32.totalorder %s182, 31
      %s184 = scalar_select %p183, %s182, 31
      %s185 = smul.addr %s184, 8
      %s186 = scalar_lea.vmem %s2, %s185
      %p187 = pneg %p87
      %p188 = pneg %p84
      %p189 = pneg %p113
      %p190 = pneg %p110
      %s191 = smul.u32 16, %s14
      %p192 = scmp.lt.s32.totalorder %s191, 31
      %s193 = scalar_select %p192, %s191, 31
      %s194 = smul.addr %s193, 7
      %s195 = smul.addr %s194, 8
      %s196 = scalar_lea.vmem %s3, %s195
      %s197 = smul.u32 16, %s14
      %p198 = scmp.lt.s32.totalorder %s197, 31
      %s199 = scalar_select %p198, %s197, 31
      %s200 = smul.addr %s199, 7
      %s201 = smul.addr %s200, 8
      %s202 = scalar_lea.vmem %s0, %s201
      %s203 = smul.u32 16, %s14
      %s204 = smul.u32 16, %s14
      %p205 = scmp.lt.s32.totalorder %s204, 31
      %s206 = scalar_select %p205, %s204, 31
      %s207 = smul.addr %s206, 8
      %s208 = scalar_lea.vmem %s1, %s207
      %s209 = smul.u32 16, %s14
      %s210 = smul.u32 16, %s14
      %p211 = scmp.lt.s32.totalorder %s210, 31
      %s212 = scalar_select %p211, %s210, 31
      %s213 = smul.addr %s212, 8
      %s214 = scalar_lea.vmem %s2, %s213
      %s215 = smul.u32 16, %s14
      %s216 = smul.u32 16, %s14
      %p217 = scmp.lt.s32.totalorder %s216, 31
      %s218 = scalar_select %p217, %s216, 31
      %s219 = smul.addr %s218, 7
      %s220 = smul.addr %s219, 8
      %s221 = scalar_lea.vmem %s3, %s220
      %s222 = smul.u32 16, %s14
      %v223 = vld [vmem:[%s202] sm:$0xff]
      %v224 = vld [vmem:[%s202 + $0x8] sm:$0xff]
      %v225 = vld [vmem:[%s202 + $0x10] sm:$0xff]
      %v226 = vld [vmem:[%s202 + $0x18] sm:$0xff]
      %v227 = vld [vmem:[%s202 + $0x20] sm:$0xff]
      %v228 = vld [vmem:[%s202 + $0x28] sm:$0xff]
      %v229 = vld [vmem:[%s202 + $0x30] sm:$0xff]
      %v230 = vld [vmem:[%s202 + $0x38] sm:$0xff]
      %v231 = vld [vmem:[%s202 + $0x40] sm:$0xff]
      %v232 = vld [vmem:[%s202 + $0x48] sm:$0xff]
      %v233 = vld [vmem:[%s202 + $0x50] sm:$0xff]
      %v234 = vld [vmem:[%s202 + $0x58] sm:$0xff]
      %v235 = vld [vmem:[%s202 + $0x60] sm:$0xff]
      %v236 = vld [vmem:[%s202 + $0x68] sm:$0xff]
      %v237 = vld [vmem:[%s202 + $0x70] sm:$0xff]
      %v238 = vld [vmem:[%s202 + $0x78] sm:$0xff]
      %v239 = vld [vmem:[%s202 + $0x80] sm:$0xff]
      %v240 = vld [vmem:[%s202 + $0x88] sm:$0xff]
      %v241 = vld [vmem:[%s202 + $0x90] sm:$0xff]
      %v242 = vld [vmem:[%s202 + $0x98] sm:$0xff]
      %v243 = vld [vmem:[%s202 + $0xa0] sm:$0xff]
      %v244 = vld [vmem:[%s202 + $0xa8] sm:$0xff]
      %v245 = vld [vmem:[%s202 + $0xb0] sm:$0xff]
      %v246 = vld [vmem:[%s202 + $0xb8] sm:$0xff]
      %v247 = vld [vmem:[%s202 + $0xc0] sm:$0xff]
      %v248 = vld [vmem:[%s202 + $0xc8] sm:$0xff]
      %v249 = vld [vmem:[%s202 + $0xd0] sm:$0xff]
      %v250 = vld [vmem:[%s202 + $0xd8] sm:$0xff]
      %v251 = vld [vmem:[%s202 + $0xe0] sm:$0xff]
      %v252 = vld [vmem:[%s202 + $0xe8] sm:$0xff]
      %v253 = vld [vmem:[%s202 + $0xf0] sm:$0xff]
      %v254 = vld [vmem:[%s202 + $0xf8] sm:$0xff]
      %v255 = vld [vmem:[%s202 + $0x100] sm:$0xff]
      %v256 = vld [vmem:[%s202 + $0x108] sm:$0xff]
      %v257 = vld [vmem:[%s202 + $0x110] sm:$0xff]
      %v258 = vld [vmem:[%s202 + $0x118] sm:$0xff]
      %v259 = vld [vmem:[%s202 + $0x120] sm:$0xff]
      %v260 = vld [vmem:[%s202 + $0x128] sm:$0xff]
      %v261 = vld [vmem:[%s202 + $0x130] sm:$0xff]
      %v262 = vld [vmem:[%s202 + $0x138] sm:$0xff]
      %v263 = vld [vmem:[%s202 + $0x140] sm:$0xff]
      %v264 = vld [vmem:[%s202 + $0x148] sm:$0xff]
      %v265 = vld [vmem:[%s202 + $0x150] sm:$0xff]
      %v266 = vld [vmem:[%s202 + $0x158] sm:$0xff]
      %v267 = vld [vmem:[%s202 + $0x160] sm:$0xff]
      %v268 = vld [vmem:[%s202 + $0x168] sm:$0xff]
      %v269 = vld [vmem:[%s202 + $0x170] sm:$0xff]
      %v270 = vld [vmem:[%s202 + $0x178] sm:$0xff]
      %v271 = vld [vmem:[%s202 + $0x180] sm:$0xff]
      %v272 = vld [vmem:[%s202 + $0x188] sm:$0xff]
      %v273 = vld [vmem:[%s202 + $0x190] sm:$0xff]
      %v274 = vld [vmem:[%s202 + $0x198] sm:$0xff]
      %v275 = vld [vmem:[%s202 + $0x1a0] sm:$0xff]
      %v276 = vld [vmem:[%s202 + $0x1a8] sm:$0xff]
      %v277 = vld [vmem:[%s202 + $0x1b0] sm:$0xff]
      %v278 = vld [vmem:[%s202 + $0x1b8] sm:$0xff]
      %v279 = vld [vmem:[%s202 + $0x1c0] sm:$0xff]
      %v280 = vld [vmem:[%s202 + $0x1c8] sm:$0xff]
      %v281 = vld [vmem:[%s202 + $0x1d0] sm:$0xff]
      %v282 = vld [vmem:[%s202 + $0x1d8] sm:$0xff]
      %v283 = vld [vmem:[%s202 + $0x1e0] sm:$0xff]
      %v284 = vld [vmem:[%s202 + $0x1e8] sm:$0xff]
      %v285 = vld [vmem:[%s202 + $0x1f0] sm:$0xff]
      %v286 = vld [vmem:[%s202 + $0x1f8] sm:$0xff]
      %v287 = vld [vmem:[%s202 + $0x200] sm:$0xff]
      %v288 = vld [vmem:[%s202 + $0x208] sm:$0xff]
      %v289 = vld [vmem:[%s202 + $0x210] sm:$0xff]
      %v290 = vld [vmem:[%s202 + $0x218] sm:$0xff]
      %v291 = vld [vmem:[%s202 + $0x220] sm:$0xff]
      %v292 = vld [vmem:[%s202 + $0x228] sm:$0xff]
      %v293 = vld [vmem:[%s202 + $0x230] sm:$0xff]
      %v294 = vld [vmem:[%s202 + $0x238] sm:$0xff]
      %v295 = vld [vmem:[%s202 + $0x240] sm:$0xff]
      %v296 = vld [vmem:[%s202 + $0x248] sm:$0xff]
      %v297 = vld [vmem:[%s202 + $0x250] sm:$0xff]
      %v298 = vld [vmem:[%s202 + $0x258] sm:$0xff]
      %v299 = vld [vmem:[%s202 + $0x260] sm:$0xff]
      %v300 = vld [vmem:[%s202 + $0x268] sm:$0xff]
      %v301 = vld [vmem:[%s202 + $0x270] sm:$0xff]
      %v302 = vld [vmem:[%s202 + $0x278] sm:$0xff]
      %v303 = vld [vmem:[%s202 + $0x280] sm:$0xff]
      %v304 = vld [vmem:[%s202 + $0x288] sm:$0xff]
      %v305 = vld [vmem:[%s202 + $0x290] sm:$0xff]
      %v306 = vld [vmem:[%s202 + $0x298] sm:$0xff]
      %v307 = vld [vmem:[%s202 + $0x2a0] sm:$0xff]
      %v308 = vld [vmem:[%s202 + $0x2a8] sm:$0xff]
      %v309 = vld [vmem:[%s202 + $0x2b0] sm:$0xff]
      %v310 = vld [vmem:[%s202 + $0x2b8] sm:$0xff]
      %v311 = vld [vmem:[%s202 + $0x2c0] sm:$0xff]
      %v312 = vld [vmem:[%s202 + $0x2c8] sm:$0xff]
      %v313 = vld [vmem:[%s202 + $0x2d0] sm:$0xff]
      %v314 = vld [vmem:[%s202 + $0x2d8] sm:$0xff]
      %v315 = vld [vmem:[%s202 + $0x2e0] sm:$0xff]
      %v316 = vld [vmem:[%s202 + $0x2e8] sm:$0xff]
      %v317 = vld [vmem:[%s202 + $0x2f0] sm:$0xff]
      %v318 = vld [vmem:[%s202 + $0x2f8] sm:$0xff]
      %v319 = vld [vmem:[%s202 + $0x300] sm:$0xff]
      %v320 = vld [vmem:[%s202 + $0x308] sm:$0xff]
      %v321 = vld [vmem:[%s202 + $0x310] sm:$0xff]
      %v322 = vld [vmem:[%s202 + $0x318] sm:$0xff]
      %v323 = vld [vmem:[%s202 + $0x320] sm:$0xff]
      %v324 = vld [vmem:[%s202 + $0x328] sm:$0xff]
      %v325 = vld [vmem:[%s202 + $0x330] sm:$0xff]
      %v326 = vld [vmem:[%s202 + $0x338] sm:$0xff]
      %v327 = vld [vmem:[%s202 + $0x340] sm:$0xff]
      %v328 = vld [vmem:[%s202 + $0x348] sm:$0xff]
      %v329 = vld [vmem:[%s202 + $0x350] sm:$0xff]
      %v330 = vld [vmem:[%s202 + $0x358] sm:$0xff]
      %v331 = vld [vmem:[%s202 + $0x360] sm:$0xff]
      %v332 = vld [vmem:[%s202 + $0x368] sm:$0xff]
      %v333 = vld [vmem:[%s202 + $0x370] sm:$0xff]
      %v334 = vld [vmem:[%s202 + $0x378] sm:$0xff]
      %v335 = vadd.f32 %v223, %v224
      %v336 = vadd.f32 %v335, %v225
      %v337 = vadd.f32 %v336, %v226
      %v338 = vadd.f32 %v337, %v227
      %v339 = vadd.f32 %v338, %v228
      %vm340 = vcmask 130048
      %v341 = vsel %vm340, %v229, 0.0
      %v342 = vadd.f32 %v339, %v341
      %343 = vadd.xlane.f32.xlu0 %v342
      %v344 = vpop.xlane.xlu0 %343
      %v345 = vadd.f32 %v230, %v231
      %v346 = vadd.f32 %v345, %v232
      %v347 = vadd.f32 %v346, %v233
      %v348 = vadd.f32 %v347, %v234
      %v349 = vadd.f32 %v348, %v235
      %v350 = vsel %vm340, %v236, 0.0
      %v351 = vadd.f32 %v349, %v350
      %352 = vadd.xlane.f32.xlu0 %v351
      %v353 = vpop.xlane.xlu0 %352
      %v354 = vadd.f32 %v237, %v238
      %v355 = vadd.f32 %v354, %v239
      %v356 = vadd.f32 %v355, %v240
      %v357 = vadd.f32 %v356, %v241
      %v358 = vadd.f32 %v357, %v242
      %v359 = vsel %vm340, %v243, 0.0
      %v360 = vadd.f32 %v358, %v359
      %361 = vadd.xlane.f32.xlu0 %v360
      %v362 = vpop.xlane.xlu0 %361
      %v363 = vadd.f32 %v244, %v245
      %v364 = vadd.f32 %v363, %v246
      %v365 = vadd.f32 %v364, %v247
      %v366 = vadd.f32 %v365, %v248
      %v367 = vadd.f32 %v366, %v249
      %v368 = vsel %vm340, %v250, 0.0
      %v369 = vadd.f32 %v367, %v368
      %370 = vadd.xlane.f32.xlu0 %v369
      %v371 = vpop.xlane.xlu0 %370
      %v372 = vadd.f32 %v251, %v252
      %v373 = vadd.f32 %v372, %v253
      %v374 = vadd.f32 %v373, %v254
      %v375 = vadd.f32 %v374, %v255
      %v376 = vadd.f32 %v375, %v256
      %v377 = vsel %vm340, %v257, 0.0
      %v378 = vadd.f32 %v376, %v377
      %379 = vadd.xlane.f32.xlu0 %v378
      %v380 = vpop.xlane.xlu0 %379
      %v381 = vadd.f32 %v258, %v259
      %v382 = vadd.f32 %v381, %v260
      %v383 = vadd.f32 %v382, %v261
      %v384 = vadd.f32 %v383, %v262
      %v385 = vadd.f32 %v384, %v263
      %v386 = vsel %vm340, %v264, 0.0
      %v387 = vadd.f32 %v385, %v386
      %388 = vadd.xlane.f32.xlu0 %v387
      %v389 = vpop.xlane.xlu0 %388
      %v390 = vadd.f32 %v265, %v266
      %v391 = vadd.f32 %v390, %v267
      %v392 = vadd.f32 %v391, %v268
      %v393 = vadd.f32 %v392, %v269
      %v394 = vadd.f32 %v393, %v270
      %v395 = vsel %vm340, %v271, 0.0
      %v396 = vadd.f32 %v394, %v395
      %397 = vadd.xlane.f32.xlu0 %v396
      %v398 = vpop.xlane.xlu0 %397
      %v399 = vadd.f32 %v272, %v273
      %v400 = vadd.f32 %v399, %v274
      %v401 = vadd.f32 %v400, %v275
      %v402 = vadd.f32 %v401, %v276
      %v403 = vadd.f32 %v402, %v277
      %v404 = vsel %vm340, %v278, 0.0
      %v405 = vadd.f32 %v403, %v404
      %406 = vadd.xlane.f32.xlu0 %v405
      %v407 = vpop.xlane.xlu0 %406
      %v408 = vadd.f32 %v279, %v280
      %v409 = vadd.f32 %v408, %v281
      %v410 = vadd.f32 %v409, %v282
      %v411 = vadd.f32 %v410, %v283
      %v412 = vadd.f32 %v411, %v284
      %v413 = vsel %vm340, %v285, 0.0
      %v414 = vadd.f32 %v412, %v413
      %415 = vadd.xlane.f32.xlu0 %v414
      %v416 = vpop.xlane.xlu0 %415
      %v417 = vadd.f32 %v286, %v287
      %v418 = vadd.f32 %v417, %v288
      %v419 = vadd.f32 %v418, %v289
      %v420 = vadd.f32 %v419, %v290
      %v421 = vadd.f32 %v420, %v291
      %v422 = vsel %vm340, %v292, 0.0
      %v423 = vadd.f32 %v421, %v422
      %424 = vadd.xlane.f32.xlu0 %v423
      %v425 = vpop.xlane.xlu0 %424
      %v426 = vadd.f32 %v293, %v294
      %v427 = vadd.f32 %v426, %v295
      %v428 = vadd.f32 %v427, %v296
      %v429 = vadd.f32 %v428, %v297
      %v430 = vadd.f32 %v429, %v298
      %v431 = vsel %vm340, %v299, 0.0
      %v432 = vadd.f32 %v430, %v431
      %433 = vadd.xlane.f32.xlu0 %v432
      %v434 = vpop.xlane.xlu0 %433
      %v435 = vadd.f32 %v300, %v301
      %v436 = vadd.f32 %v435, %v302
      %v437 = vadd.f32 %v436, %v303
      %v438 = vadd.f32 %v437, %v304
      %v439 = vadd.f32 %v438, %v305
      %v440 = vsel %vm340, %v306, 0.0
      %v441 = vadd.f32 %v439, %v440
      %442 = vadd.xlane.f32.xlu0 %v441
      %v443 = vpop.xlane.xlu0 %442
      %v444 = vadd.f32 %v307, %v308
      %v445 = vadd.f32 %v444, %v309
      %v446 = vadd.f32 %v445, %v310
      %v447 = vadd.f32 %v446, %v311
      %v448 = vadd.f32 %v447, %v312
      %v449 = vsel %vm340, %v313, 0.0
      %v450 = vadd.f32 %v448, %v449
      %451 = vadd.xlane.f32.xlu0 %v450
      %v452 = vpop.xlane.xlu0 %451
      %v453 = vadd.f32 %v314, %v315
      %v454 = vadd.f32 %v453, %v316
      %v455 = vadd.f32 %v454, %v317
      %v456 = vadd.f32 %v455, %v318
      %v457 = vadd.f32 %v456, %v319
      %v458 = vsel %vm340, %v320, 0.0
      %v459 = vadd.f32 %v457, %v458
      %460 = vadd.xlane.f32.xlu0 %v459
      %v461 = vpop.xlane.xlu0 %460
      %v462 = vadd.f32 %v321, %v322
      %v463 = vadd.f32 %v462, %v323
      %v464 = vadd.f32 %v463, %v324
      %v465 = vadd.f32 %v464, %v325
      %v466 = vadd.f32 %v465, %v326
      %v467 = vsel %vm340, %v327, 0.0
      %v468 = vadd.f32 %v466, %v467
      %469 = vadd.xlane.f32.xlu0 %v468
      %v470 = vpop.xlane.xlu0 %469
      %v471 = vadd.f32 %v328, %v329
      %v472 = vadd.f32 %v471, %v330
      %v473 = vadd.f32 %v472, %v331
      %v474 = vadd.f32 %v473, %v332
      %v475 = vadd.f32 %v474, %v333
      %v476 = vsel %vm340, %v334, 0.0
      %v477 = vadd.f32 %v475, %v476
      %478 = vadd.xlane.f32.xlu0 %v477
      %v479 = vpop.xlane.xlu0 %478
      %v480 = vadd.f32 %v344, 0.0
      %v481 = vadd.f32 %v353, 0.0
      %v482 = vadd.f32 %v362, 0.0
      %v483 = vadd.f32 %v371, 0.0
      %v484 = vadd.f32 %v380, 0.0
      %v485 = vadd.f32 %v389, 0.0
      %v486 = vadd.f32 %v398, 0.0
      %v487 = vadd.f32 %v407, 0.0
      %v488 = vadd.f32 %v416, 0.0
      %v489 = vadd.f32 %v425, 0.0
      %v490 = vadd.f32 %v434, 0.0
      %v491 = vadd.f32 %v443, 0.0
      %v492 = vadd.f32 %v452, 0.0
      %v493 = vadd.f32 %v461, 0.0
      %v494 = vadd.f32 %v470, 0.0
      %v495 = vadd.f32 %v479, 0.0
      %v496 = vmul.f32 %v480, 0.0012755102
      %v497 = vmul.f32 %v481, 0.0012755102
      %v498 = vmul.f32 %v482, 0.0012755102
      %v499 = vmul.f32 %v483, 0.0012755102
      %v500 = vmul.f32 %v484, 0.0012755102
      %v501 = vmul.f32 %v485, 0.0012755102
      %v502 = vmul.f32 %v486, 0.0012755102
      %v503 = vmul.f32 %v487, 0.0012755102
      %v504 = vmul.f32 %v488, 0.0012755102
      %v505 = vmul.f32 %v489, 0.0012755102
      %v506 = vmul.f32 %v490, 0.0012755102
      %v507 = vmul.f32 %v491, 0.0012755102
      %v508 = vmul.f32 %v492, 0.0012755102
      %v509 = vmul.f32 %v493, 0.0012755102
      %v510 = vmul.f32 %v494, 0.0012755102
      %v511 = vmul.f32 %v495, 0.0012755102
      %v512 = vsub.f32 %v223, %v496
      %v513 = vsub.f32 %v224, %v496
      %v514 = vsub.f32 %v225, %v496
      %v515 = vsub.f32 %v226, %v496
      %v516 = vsub.f32 %v227, %v496
      %v517 = vsub.f32 %v228, %v496
      %v518 = vsub.f32 %v229, %v496
      %v519 = vsub.f32 %v230, %v497
      %v520 = vsub.f32 %v231, %v497
      %v521 = vsub.f32 %v232, %v497
      %v522 = vsub.f32 %v233, %v497
      %v523 = vsub.f32 %v234, %v497
      %v524 = vsub.f32 %v235, %v497
      %v525 = vsub.f32 %v236, %v497
      %v526 = vsub.f32 %v237, %v498
      %v527 = vsub.f32 %v238, %v498
      %v528 = vsub.f32 %v239, %v498
      %v529 = vsub.f32 %v240, %v498
      %v530 = vsub.f32 %v241, %v498
      %v531 = vsub.f32 %v242, %v498
      %v532 = vsub.f32 %v243, %v498
      %v533 = vsub.f32 %v244, %v499
      %v534 = vsub.f32 %v245, %v499
      %v535 = vsub.f32 %v246, %v499
      %v536 = vsub.f32 %v247, %v499
      %v537 = vsub.f32 %v248, %v499
      %v538 = vsub.f32 %v249, %v499
      %v539 = vsub.f32 %v250, %v499
      %v540 = vsub.f32 %v251, %v500
      %v541 = vsub.f32 %v252, %v500
      %v542 = vsub.f32 %v253, %v500
      %v543 = vsub.f32 %v254, %v500
      %v544 = vsub.f32 %v255, %v500
      %v545 = vsub.f32 %v256, %v500
      %v546 = vsub.f32 %v257, %v500
      %v547 = vsub.f32 %v258, %v501
      %v548 = vsub.f32 %v259, %v501
      %v549 = vsub.f32 %v260, %v501
      %v550 = vsub.f32 %v261, %v501
      %v551 = vsub.f32 %v262, %v501
      %v552 = vsub.f32 %v263, %v501
      %v553 = vsub.f32 %v264, %v501
      %v554 = vsub.f32 %v265, %v502
      %v555 = vsub.f32 %v266, %v502
      %v556 = vsub.f32 %v267, %v502
      %v557 = vsub.f32 %v268, %v502
      %v558 = vsub.f32 %v269, %v502
      %v559 = vsub.f32 %v270, %v502
      %v560 = vsub.f32 %v271, %v502
      %v561 = vsub.f32 %v272, %v503
      %v562 = vsub.f32 %v273, %v503
      %v563 = vsub.f32 %v274, %v503
      %v564 = vsub.f32 %v275, %v503
      %v565 = vsub.f32 %v276, %v503
      %v566 = vsub.f32 %v277, %v503
      %v567 = vsub.f32 %v278, %v503
      %v568 = vsub.f32 %v279, %v504
      %v569 = vsub.f32 %v280, %v504
      %v570 = vsub.f32 %v281, %v504
      %v571 = vsub.f32 %v282, %v504
      %v572 = vsub.f32 %v283, %v504
      %v573 = vsub.f32 %v284, %v504
      %v574 = vsub.f32 %v285, %v504
      %v575 = vsub.f32 %v286, %v505
      %v576 = vsub.f32 %v287, %v505
      %v577 = vsub.f32 %v288, %v505
      %v578 = vsub.f32 %v289, %v505
      %v579 = vsub.f32 %v290, %v505
      %v580 = vsub.f32 %v291, %v505
      %v581 = vsub.f32 %v292, %v505
      %v582 = vsub.f32 %v293, %v506
      %v583 = vsub.f32 %v294, %v506
      %v584 = vsub.f32 %v295, %v506
      %v585 = vsub.f32 %v296, %v506
      %v586 = vsub.f32 %v297, %v506
      %v587 = vsub.f32 %v298, %v506
      %v588 = vsub.f32 %v299, %v506
      %v589 = vsub.f32 %v300, %v507
      %v590 = vsub.f32 %v301, %v507
      %v591 = vsub.f32 %v302, %v507
      %v592 = vsub.f32 %v303, %v507
      %v593 = vsub.f32 %v304, %v507
      %v594 = vsub.f32 %v305, %v507
      %v595 = vsub.f32 %v306, %v507
      %v596 = vsub.f32 %v307, %v508
      %v597 = vsub.f32 %v308, %v508
      %v598 = vsub.f32 %v309, %v508
      %v599 = vsub.f32 %v310, %v508
      %v600 = vsub.f32 %v311, %v508
      %v601 = vsub.f32 %v312, %v508
      %v602 = vsub.f32 %v313, %v508
      %v603 = vsub.f32 %v314, %v509
      %v604 = vsub.f32 %v315, %v509
      %v605 = vsub.f32 %v316, %v509
      %v606 = vsub.f32 %v317, %v509
      %v607 = vsub.f32 %v318, %v509
      %v608 = vsub.f32 %v319, %v509
      %v609 = vsub.f32 %v320, %v509
      %v610 = vsub.f32 %v321, %v510
      %v611 = vsub.f32 %v322, %v510
      %v612 = vsub.f32 %v323, %v510
      %v613 = vsub.f32 %v324, %v510
      %v614 = vsub.f32 %v325, %v510
      %v615 = vsub.f32 %v326, %v510
      %v616 = vsub.f32 %v327, %v510
      %v617 = vsub.f32 %v328, %v511
      %v618 = vsub.f32 %v329, %v511
      %v619 = vsub.f32 %v330, %v511
      %v620 = vsub.f32 %v331, %v511
      %v621 = vsub.f32 %v332, %v511
      %v622 = vsub.f32 %v333, %v511
      %v623 = vsub.f32 %v334, %v511
      %v624 = vmul.f32 %v512, %v512
      %v625 = vmul.f32 %v513, %v513
      %v626 = vmul.f32 %v514, %v514
      %v627 = vmul.f32 %v515, %v515
      %v628 = vmul.f32 %v516, %v516
      %v629 = vmul.f32 %v517, %v517
      %v630 = vmul.f32 %v518, %v518
      %v631 = vmul.f32 %v519, %v519
      %v632 = vmul.f32 %v520, %v520
      %v633 = vmul.f32 %v521, %v521
      %v634 = vmul.f32 %v522, %v522
      %v635 = vmul.f32 %v523, %v523
      %v636 = vmul.f32 %v524, %v524
      %v637 = vmul.f32 %v525, %v525
      %v638 = vmul.f32 %v526, %v526
      %v639 = vmul.f32 %v527, %v527
      %v640 = vmul.f32 %v528, %v528
      %v641 = vmul.f32 %v529, %v529
      %v642 = vmul.f32 %v530, %v530
      %v643 = vmul.f32 %v531, %v531
      %v644 = vmul.f32 %v532, %v532
      %v645 = vmul.f32 %v533, %v533
      %v646 = vmul.f32 %v534, %v534
      %v647 = vmul.f32 %v535, %v535
      %v648 = vmul.f32 %v536, %v536
      %v649 = vmul.f32 %v537, %v537
      %v650 = vmul.f32 %v538, %v538
      %v651 = vmul.f32 %v539, %v539
      %v652 = vmul.f32 %v540, %v540
      %v653 = vmul.f32 %v541, %v541
      %v654 = vmul.f32 %v542, %v542
      %v655 = vmul.f32 %v543, %v543
      %v656 = vmul.f32 %v544, %v544
      %v657 = vmul.f32 %v545, %v545
      %v658 = vmul.f32 %v546, %v546
      %v659 = vmul.f32 %v547, %v547
      %v660 = vmul.f32 %v548, %v548
      %v661 = vmul.f32 %v549, %v549
      %v662 = vmul.f32 %v550, %v550
      %v663 = vmul.f32 %v551, %v551
      %v664 = vmul.f32 %v552, %v552
      %v665 = vmul.f32 %v553, %v553
      %v666 = vmul.f32 %v554, %v554
      %v667 = vmul.f32 %v555, %v555
      %v668 = vmul.f32 %v556, %v556
      %v669 = vmul.f32 %v557, %v557
      %v670 = vmul.f32 %v558, %v558
      %v671 = vmul.f32 %v559, %v559
      %v672 = vmul.f32 %v560, %v560
      %v673 = vmul.f32 %v561, %v561
      %v674 = vmul.f32 %v562, %v562
      %v675 = vmul.f32 %v563, %v563
      %v676 = vmul.f32 %v564, %v564
      %v677 = vmul.f32 %v565, %v565
      %v678 = vmul.f32 %v566, %v566
      %v679 = vmul.f32 %v567, %v567
      %v680 = vmul.f32 %v568, %v568
      %v681 = vmul.f32 %v569, %v569
      %v682 = vmul.f32 %v570, %v570
      %v683 = vmul.f32 %v571, %v571
      %v684 = vmul.f32 %v572, %v572
      %v685 = vmul.f32 %v573, %v573
      %v686 = vmul.f32 %v574, %v574
      %v687 = vmul.f32 %v575, %v575
      %v688 = vmul.f32 %v576, %v576
      %v689 = vmul.f32 %v577, %v577
      %v690 = vmul.f32 %v578, %v578
      %v691 = vmul.f32 %v579, %v579
      %v692 = vmul.f32 %v580, %v580
      %v693 = vmul.f32 %v581, %v581
      %v694 = vmul.f32 %v582, %v582
      %v695 = vmul.f32 %v583, %v583
      %v696 = vmul.f32 %v584, %v584
      %v697 = vmul.f32 %v585, %v585
      %v698 = vmul.f32 %v586, %v586
      %v699 = vmul.f32 %v587, %v587
      %v700 = vmul.f32 %v588, %v588
      %v701 = vmul.f32 %v589, %v589
      %v702 = vmul.f32 %v590, %v590
      %v703 = vmul.f32 %v591, %v591
      %v704 = vmul.f32 %v592, %v592
      %v705 = vmul.f32 %v593, %v593
      %v706 = vmul.f32 %v594, %v594
      %v707 = vmul.f32 %v595, %v595
      %v708 = vmul.f32 %v596, %v596
      %v709 = vmul.f32 %v597, %v597
      %v710 = vmul.f32 %v598, %v598
      %v711 = vmul.f32 %v599, %v599
      %v712 = vmul.f32 %v600, %v600
      %v713 = vmul.f32 %v601, %v601
      %v714 = vmul.f32 %v602, %v602
      %v715 = vmul.f32 %v603, %v603
      %v716 = vmul.f32 %v604, %v604
      %v717 = vmul.f32 %v605, %v605
      %v718 = vmul.f32 %v606, %v606
      %v719 = vmul.f32 %v607, %v607
      %v720 = vmul.f32 %v608, %v608
      %v721 = vmul.f32 %v609, %v609
      %v722 = vmul.f32 %v610, %v610
      %v723 = vmul.f32 %v611, %v611
      %v724 = vmul.f32 %v612, %v612
      %v725 = vmul.f32 %v613, %v613
      %v726 = vmul.f32 %v614, %v614
      %v727 = vmul.f32 %v615, %v615
      %v728 = vmul.f32 %v616, %v616
      %v729 = vmul.f32 %v617, %v617
      %v730 = vmul.f32 %v618, %v618
      %v731 = vmul.f32 %v619, %v619
      %v732 = vmul.f32 %v620, %v620
      %v733 = vmul.f32 %v621, %v621
      %v734 = vmul.f32 %v622, %v622
      %v735 = vmul.f32 %v623, %v623
      %v736 = vadd.f32 %v624, %v625
      %v737 = vadd.f32 %v736, %v626
      %v738 = vadd.f32 %v737, %v627
      %v739 = vadd.f32 %v738, %v628
      %v740 = vadd.f32 %v739, %v629
      %v741 = vsel %vm340, %v630, 0.0
      %v742 = vadd.f32 %v740, %v741
      %743 = vadd.xlane.f32.xlu0 %v742
      %v744 = vpop.xlane.xlu0 %743
      %v745 = vadd.f32 %v631, %v632
      %v746 = vadd.f32 %v745, %v633
      %v747 = vadd.f32 %v746, %v634
      %v748 = vadd.f32 %v747, %v635
      %v749 = vadd.f32 %v748, %v636
      %v750 = vsel %vm340, %v637, 0.0
      %v751 = vadd.f32 %v749, %v750
      %752 = vadd.xlane.f32.xlu0 %v751
      %v753 = vpop.xlane.xlu0 %752
      %v754 = vadd.f32 %v638, %v639
      %v755 = vadd.f32 %v754, %v640
      %v756 = vadd.f32 %v755, %v641
      %v757 = vadd.f32 %v756, %v642
      %v758 = vadd.f32 %v757, %v643
      %v759 = vsel %vm340, %v644, 0.0
      %v760 = vadd.f32 %v758, %v759
      %761 = vadd.xlane.f32.xlu0 %v760
      %v762 = vpop.xlane.xlu0 %761
      %v763 = vadd.f32 %v645, %v646
      %v764 = vadd.f32 %v763, %v647
      %v765 = vadd.f32 %v764, %v648
      %v766 = vadd.f32 %v765, %v649
      %v767 = vadd.f32 %v766, %v650
      %v768 = vsel %vm340, %v651, 0.0
      %v769 = vadd.f32 %v767, %v768
      %770 = vadd.xlane.f32.xlu0 %v769
      %v771 = vpop.xlane.xlu0 %770
      %v772 = vadd.f32 %v652, %v653
      %v773 = vadd.f32 %v772, %v654
      %v774 = vadd.f32 %v773, %v655
      %v775 = vadd.f32 %v774, %v656
      %v776 = vadd.f32 %v775, %v657
      %v777 = vsel %vm340, %v658, 0.0
      %v778 = vadd.f32 %v776, %v777
      %779 = vadd.xlane.f32.xlu0 %v778
      %v780 = vpop.xlane.xlu0 %779
      %v781 = vadd.f32 %v659, %v660
      %v782 = vadd.f32 %v781, %v661
      %v783 = vadd.f32 %v782, %v662
      %v784 = vadd.f32 %v783, %v663
      %v785 = vadd.f32 %v784, %v664
      %v786 = vsel %vm340, %v665, 0.0
      %v787 = vadd.f32 %v785, %v786
      %788 = vadd.xlane.f32.xlu0 %v787
      %v789 = vpop.xlane.xlu0 %788
      %v790 = vadd.f32 %v666, %v667
      %v791 = vadd.f32 %v790, %v668
      %v792 = vadd.f32 %v791, %v669
      %v793 = vadd.f32 %v792, %v670
      %v794 = vadd.f32 %v793, %v671
      %v795 = vsel %vm340, %v672, 0.0
      %v796 = vadd.f32 %v794, %v795
      %797 = vadd.xlane.f32.xlu0 %v796
      %v798 = vpop.xlane.xlu0 %797
      %v799 = vadd.f32 %v673, %v674
      %v800 = vadd.f32 %v799, %v675
      %v801 = vadd.f32 %v800, %v676
      %v802 = vadd.f32 %v801, %v677
      %v803 = vadd.f32 %v802, %v678
      %v804 = vsel %vm340, %v679, 0.0
      %v805 = vadd.f32 %v803, %v804
      %806 = vadd.xlane.f32.xlu0 %v805
      %v807 = vpop.xlane.xlu0 %806
      %v808 = vadd.f32 %v680, %v681
      %v809 = vadd.f32 %v808, %v682
      %v810 = vadd.f32 %v809, %v683
      %v811 = vadd.f32 %v810, %v684
      %v812 = vadd.f32 %v811, %v685
      %v813 = vsel %vm340, %v686, 0.0
      %v814 = vadd.f32 %v812, %v813
      %815 = vadd.xlane.f32.xlu0 %v814
      %v816 = vpop.xlane.xlu0 %815
      %v817 = vadd.f32 %v687, %v688
      %v818 = vadd.f32 %v817, %v689
      %v819 = vadd.f32 %v818, %v690
      %v820 = vadd.f32 %v819, %v691
      %v821 = vadd.f32 %v820, %v692
      %v822 = vsel %vm340, %v693, 0.0
      %v823 = vadd.f32 %v821, %v822
      %824 = vadd.xlane.f32.xlu0 %v823
      %v825 = vpop.xlane.xlu0 %824
      %v826 = vadd.f32 %v694, %v695
      %v827 = vadd.f32 %v826, %v696
      %v828 = vadd.f32 %v827, %v697
      %v829 = vadd.f32 %v828, %v698
      %v830 = vadd.f32 %v829, %v699
      %v831 = vsel %vm340, %v700, 0.0
      %v832 = vadd.f32 %v830, %v831
      %833 = vadd.xlane.f32.xlu0 %v832
      %v834 = vpop.xlane.xlu0 %833
      %v835 = vadd.f32 %v701, %v702
      %v836 = vadd.f32 %v835, %v703
      %v837 = vadd.f32 %v836, %v704
      %v838 = vadd.f32 %v837, %v705
      %v839 = vadd.f32 %v838, %v706
      %v840 = vsel %vm340, %v707, 0.0
      %v841 = vadd.f32 %v839, %v840
      %842 = vadd.xlane.f32.xlu0 %v841
      %v843 = vpop.xlane.xlu0 %842
      %v844 = vadd.f32 %v708, %v709
      %v845 = vadd.f32 %v844, %v710
      %v846 = vadd.f32 %v845, %v711
      %v847 = vadd.f32 %v846, %v712
      %v848 = vadd.f32 %v847, %v713
      %v849 = vsel %vm340, %v714, 0.0
      %v850 = vadd.f32 %v848, %v849
      %851 = vadd.xlane.f32.xlu0 %v850
      %v852 = vpop.xlane.xlu0 %851
      %v853 = vadd.f32 %v715, %v716
      %v854 = vadd.f32 %v853, %v717
      %v855 = vadd.f32 %v854, %v718
      %v856 = vadd.f32 %v855, %v719
      %v857 = vadd.f32 %v856, %v720
      %v858 = vsel %vm340, %v721, 0.0
      %v859 = vadd.f32 %v857, %v858
      %860 = vadd.xlane.f32.xlu0 %v859
      %v861 = vpop.xlane.xlu0 %860
      %v862 = vadd.f32 %v722, %v723
      %v863 = vadd.f32 %v862, %v724
      %v864 = vadd.f32 %v863, %v725
      %v865 = vadd.f32 %v864, %v726
      %v866 = vadd.f32 %v865, %v727
      %v867 = vsel %vm340, %v728, 0.0
      %v868 = vadd.f32 %v866, %v867
      %869 = vadd.xlane.f32.xlu0 %v868
      %v870 = vpop.xlane.xlu0 %869
      %v871 = vadd.f32 %v729, %v730
      %v872 = vadd.f32 %v871, %v731
      %v873 = vadd.f32 %v872, %v732
      %v874 = vadd.f32 %v873, %v733
      %v875 = vadd.f32 %v874, %v734
      %v876 = vsel %vm340, %v735, 0.0
      %v877 = vadd.f32 %v875, %v876
      %878 = vadd.xlane.f32.xlu0 %v877
      %v879 = vpop.xlane.xlu0 %878
      %v880 = vadd.f32 %v744, 0.0
      %v881 = vadd.f32 %v753, 0.0
      %v882 = vadd.f32 %v762, 0.0
      %v883 = vadd.f32 %v771, 0.0
      %v884 = vadd.f32 %v780, 0.0
      %v885 = vadd.f32 %v789, 0.0
      %v886 = vadd.f32 %v798, 0.0
      %v887 = vadd.f32 %v807, 0.0
      %v888 = vadd.f32 %v816, 0.0
      %v889 = vadd.f32 %v825, 0.0
      %v890 = vadd.f32 %v834, 0.0
      %v891 = vadd.f32 %v843, 0.0
      %v892 = vadd.f32 %v852, 0.0
      %v893 = vadd.f32 %v861, 0.0
      %v894 = vadd.f32 %v870, 0.0
      %v895 = vadd.f32 %v879, 0.0
      %v896 = vmul.f32 %v880, 0.0012755102
      %v897 = vmul.f32 %v881, 0.0012755102
      %v898 = vmul.f32 %v882, 0.0012755102
      %v899 = vmul.f32 %v883, 0.0012755102
      %v900 = vmul.f32 %v884, 0.0012755102
      %v901 = vmul.f32 %v885, 0.0012755102
      %v902 = vmul.f32 %v886, 0.0012755102
      %v903 = vmul.f32 %v887, 0.0012755102
      %v904 = vmul.f32 %v888, 0.0012755102
      %v905 = vmul.f32 %v889, 0.0012755102
      %v906 = vmul.f32 %v890, 0.0012755102
      %v907 = vmul.f32 %v891, 0.0012755102
      %v908 = vmul.f32 %v892, 0.0012755102
      %v909 = vmul.f32 %v893, 0.0012755102
      %v910 = vmul.f32 %v894, 0.0012755102
      %v911 = vmul.f32 %v895, 0.0012755102
      %v912 = vadd.f32 %v896, 1e-05
      %v913 = vadd.f32 %v897, 1e-05
      %v914 = vadd.f32 %v898, 1e-05
      %v915 = vadd.f32 %v899, 1e-05
      %v916 = vadd.f32 %v900, 1e-05
      %v917 = vadd.f32 %v901, 1e-05
      %v918 = vadd.f32 %v902, 1e-05
      %v919 = vadd.f32 %v903, 1e-05
      %v920 = vadd.f32 %v904, 1e-05
      %v921 = vadd.f32 %v905, 1e-05
      %v922 = vadd.f32 %v906, 1e-05
      %v923 = vadd.f32 %v907, 1e-05
      %v924 = vadd.f32 %v908, 1e-05
      %v925 = vadd.f32 %v909, 1e-05
      %v926 = vadd.f32 %v910, 1e-05
      %v927 = vadd.f32 %v911, 1e-05
      %v928 = vrsqrt.pop %v912
      %v929 = vrsqrt.pop %v913
      %v930 = vrsqrt.pop %v914
      %v931 = vrsqrt.pop %v915
      %v932 = vrsqrt.pop %v916
      %v933 = vrsqrt.pop %v917
      %v934 = vrsqrt.pop %v918
      %v935 = vrsqrt.pop %v919
      %v936 = vrsqrt.pop %v920
      %v937 = vrsqrt.pop %v921
      %v938 = vrsqrt.pop %v922
      %v939 = vrsqrt.pop %v923
      %v940 = vrsqrt.pop %v924
      %v941 = vrsqrt.pop %v925
      %v942 = vrsqrt.pop %v926
      %v943 = vrsqrt.pop %v927
      %v944 = vld [vmem:[%s208] sm:$0xff]
      %v945 = vld [vmem:[%s208 + $0x8] sm:$0xff]
      %v946 = vld [vmem:[%s208 + $0x10] sm:$0xff]
      %v947 = vld [vmem:[%s208 + $0x18] sm:$0xff]
      %v948 = vld [vmem:[%s208 + $0x20] sm:$0xff]
      %v949 = vld [vmem:[%s208 + $0x28] sm:$0xff]
      %v950 = vld [vmem:[%s208 + $0x30] sm:$0xff]
      %v951 = vld [vmem:[%s208 + $0x38] sm:$0xff]
      %v952 = vld [vmem:[%s208 + $0x40] sm:$0xff]
      %v953 = vld [vmem:[%s208 + $0x48] sm:$0xff]
      %v954 = vld [vmem:[%s208 + $0x50] sm:$0xff]
      %v955 = vld [vmem:[%s208 + $0x58] sm:$0xff]
      %v956 = vld [vmem:[%s208 + $0x60] sm:$0xff]
      %v957 = vld [vmem:[%s208 + $0x68] sm:$0xff]
      %v958 = vld [vmem:[%s208 + $0x70] sm:$0xff]
      %v959 = vld [vmem:[%s208 + $0x78] sm:$0xff]
      %v960 = vmul.f32 %v944, %v928
      %v961 = vmul.f32 %v945, %v929
      %v962 = vmul.f32 %v946, %v930
      %v963 = vmul.f32 %v947, %v931
      %v964 = vmul.f32 %v948, %v932
      %v965 = vmul.f32 %v949, %v933
      %v966 = vmul.f32 %v950, %v934
      %v967 = vmul.f32 %v951, %v935
      %v968 = vmul.f32 %v952, %v936
      %v969 = vmul.f32 %v953, %v937
      %v970 = vmul.f32 %v954, %v938
      %v971 = vmul.f32 %v955, %v939
      %v972 = vmul.f32 %v956, %v940
      %v973 = vmul.f32 %v957, %v941
      %v974 = vmul.f32 %v958, %v942
      %v975 = vmul.f32 %v959, %v943
      %977 = vset.pattern.permute.xlu0 0
      %978 = vperm.xlu0 %977, %v960
      %v979 = vpop.permute.xlu0 %978
      %982 = vset.pattern.permute.xlu0 0
      %983 = vperm.xlu0 %982, %v961
      %v984 = vpop.permute.xlu0 %983
      %987 = vset.pattern.permute.xlu0 0
      %988 = vperm.xlu0 %987, %v962
      %v989 = vpop.permute.xlu0 %988
      %992 = vset.pattern.permute.xlu0 0
      %993 = vperm.xlu0 %992, %v963
      %v994 = vpop.permute.xlu0 %993
      %997 = vset.pattern.permute.xlu0 0
      %998 = vperm.xlu0 %997, %v964
      %v999 = vpop.permute.xlu0 %998
      %1002 = vset.pattern.permute.xlu0 0
      %1003 = vperm.xlu0 %1002, %v965
      %v1004 = vpop.permute.xlu0 %1003
      %1007 = vset.pattern.permute.xlu0 0
      %1008 = vperm.xlu0 %1007, %v966
      %v1009 = vpop.permute.xlu0 %1008
      %1012 = vset.pattern.permute.xlu0 0
      %1013 = vperm.xlu0 %1012, %v967
      %v1014 = vpop.permute.xlu0 %1013
      %1017 = vset.pattern.permute.xlu0 0
      %1018 = vperm.xlu0 %1017, %v968
      %v1019 = vpop.permute.xlu0 %1018
      %1022 = vset.pattern.permute.xlu0 0
      %1023 = vperm.xlu0 %1022, %v969
      %v1024 = vpop.permute.xlu0 %1023
      %1027 = vset.pattern.permute.xlu0 0
      %1028 = vperm.xlu0 %1027, %v970
      %v1029 = vpop.permute.xlu0 %1028
      %1032 = vset.pattern.permute.xlu0 0
      %1033 = vperm.xlu0 %1032, %v971
      %v1034 = vpop.permute.xlu0 %1033
      %1037 = vset.pattern.permute.xlu0 0
      %1038 = vperm.xlu0 %1037, %v972
      %v1039 = vpop.permute.xlu0 %1038
      %1042 = vset.pattern.permute.xlu0 0
      %1043 = vperm.xlu0 %1042, %v973
      %v1044 = vpop.permute.xlu0 %1043
      %1047 = vset.pattern.permute.xlu0 0
      %1048 = vperm.xlu0 %1047, %v974
      %v1049 = vpop.permute.xlu0 %1048
      %1052 = vset.pattern.permute.xlu0 0
      %1053 = vperm.xlu0 %1052, %v975
      %v1054 = vpop.permute.xlu0 %1053
      %v1056 = vmul.f32 %v512, %v979
      %v1057 = vmul.f32 %v513, %v979
      %v1058 = vmul.f32 %v514, %v979
      %v1059 = vmul.f32 %v515, %v979
      %v1060 = vmul.f32 %v516, %v979
      %v1061 = vmul.f32 %v517, %v979
      %v1062 = vmul.f32 %v518, %v979
      %v1063 = vmul.f32 %v519, %v984
      %v1064 = vmul.f32 %v520, %v984
      %v1065 = vmul.f32 %v521, %v984
      %v1066 = vmul.f32 %v522, %v984
      %v1067 = vmul.f32 %v523, %v984
      %v1068 = vmul.f32 %v524, %v984
      %v1069 = vmul.f32 %v525, %v984
      %v1070 = vmul.f32 %v526, %v989
      %v1071 = vmul.f32 %v527, %v989
      %v1072 = vmul.f32 %v528, %v989
      %v1073 = vmul.f32 %v529, %v989
      %v1074 = vmul.f32 %v530, %v989
      %v1075 = vmul.f32 %v531, %v989
      %v1076 = vmul.f32 %v532, %v989
      %v1077 = vmul.f32 %v533, %v994
      %v1078 = vmul.f32 %v534, %v994
      %v1079 = vmul.f32 %v535, %v994
      %v1080 = vmul.f32 %v536, %v994
      %v1081 = vmul.f32 %v537, %v994
      %v1082 = vmul.f32 %v538, %v994
      %v1083 = vmul.f32 %v539, %v994
      %v1084 = vmul.f32 %v540, %v999
      %v1085 = vmul.f32 %v541, %v999
      %v1086 = vmul.f32 %v542, %v999
      %v1087 = vmul.f32 %v543, %v999
      %v1088 = vmul.f32 %v544, %v999
      %v1089 = vmul.f32 %v545, %v999
      %v1090 = vmul.f32 %v546, %v999
      %v1091 = vmul.f32 %v547, %v1004
      %v1092 = vmul.f32 %v548, %v1004
      %v1093 = vmul.f32 %v549, %v1004
      %v1094 = vmul.f32 %v550, %v1004
      %v1095 = vmul.f32 %v551, %v1004
      %v1096 = vmul.f32 %v552, %v1004
      %v1097 = vmul.f32 %v553, %v1004
      %v1098 = vmul.f32 %v554, %v1009
      %v1099 = vmul.f32 %v555, %v1009
      %v1100 = vmul.f32 %v556, %v1009
      %v1101 = vmul.f32 %v557, %v1009
      %v1102 = vmul.f32 %v558, %v1009
      %v1103 = vmul.f32 %v559, %v1009
      %v1104 = vmul.f32 %v560, %v1009
      %v1105 = vmul.f32 %v561, %v1014
      %v1106 = vmul.f32 %v562, %v1014
      %v1107 = vmul.f32 %v563, %v1014
      %v1108 = vmul.f32 %v564, %v1014
      %v1109 = vmul.f32 %v565, %v1014
      %v1110 = vmul.f32 %v566, %v1014
      %v1111 = vmul.f32 %v567, %v1014
      %v1112 = vmul.f32 %v568, %v1019
      %v1113 = vmul.f32 %v569, %v1019
      %v1114 = vmul.f32 %v570, %v1019
      %v1115 = vmul.f32 %v571, %v1019
      %v1116 = vmul.f32 %v572, %v1019
      %v1117 = vmul.f32 %v573, %v1019
      %v1118 = vmul.f32 %v574, %v1019
      %v1119 = vmul.f32 %v575, %v1024
      %v1120 = vmul.f32 %v576, %v1024
      %v1121 = vmul.f32 %v577, %v1024
      %v1122 = vmul.f32 %v578, %v1024
      %v1123 = vmul.f32 %v579, %v1024
      %v1124 = vmul.f32 %v580, %v1024
      %v1125 = vmul.f32 %v581, %v1024
      %v1126 = vmul.f32 %v582, %v1029
      %v1127 = vmul.f32 %v583, %v1029
      %v1128 = vmul.f32 %v584, %v1029
      %v1129 = vmul.f32 %v585, %v1029
      %v1130 = vmul.f32 %v586, %v1029
      %v1131 = vmul.f32 %v587, %v1029
      %v1132 = vmul.f32 %v588, %v1029
      %v1133 = vmul.f32 %v589, %v1034
      %v1134 = vmul.f32 %v590, %v1034
      %v1135 = vmul.f32 %v591, %v1034
      %v1136 = vmul.f32 %v592, %v1034
      %v1137 = vmul.f32 %v593, %v1034
      %v1138 = vmul.f32 %v594, %v1034
      %v1139 = vmul.f32 %v595, %v1034
      %v1140 = vmul.f32 %v596, %v1039
      %v1141 = vmul.f32 %v597, %v1039
      %v1142 = vmul.f32 %v598, %v1039
      %v1143 = vmul.f32 %v599, %v1039
      %v1144 = vmul.f32 %v600, %v1039
      %v1145 = vmul.f32 %v601, %v1039
      %v1146 = vmul.f32 %v602, %v1039
      %v1147 = vmul.f32 %v603, %v1044
      %v1148 = vmul.f32 %v604, %v1044
      %v1149 = vmul.f32 %v605, %v1044
      %v1150 = vmul.f32 %v606, %v1044
      %v1151 = vmul.f32 %v607, %v1044
      %v1152 = vmul.f32 %v608, %v1044
      %v1153 = vmul.f32 %v609, %v1044
      %v1154 = vmul.f32 %v610, %v1049
      %v1155 = vmul.f32 %v611, %v1049
      %v1156 = vmul.f32 %v612, %v1049
      %v1157 = vmul.f32 %v613, %v1049
      %v1158 = vmul.f32 %v614, %v1049
      %v1159 = vmul.f32 %v615, %v1049
      %v1160 = vmul.f32 %v616, %v1049
      %v1161 = vmul.f32 %v617, %v1054
      %v1162 = vmul.f32 %v618, %v1054
      %v1163 = vmul.f32 %v619, %v1054
      %v1164 = vmul.f32 %v620, %v1054
      %v1165 = vmul.f32 %v621, %v1054
      %v1166 = vmul.f32 %v622, %v1054
      %v1167 = vmul.f32 %v623, %v1054
      %v1168 = vld [vmem:[%s214] sm:$0xff]
      %v1169 = vld [vmem:[%s214 + $0x8] sm:$0xff]
      %v1170 = vld [vmem:[%s214 + $0x10] sm:$0xff]
      %v1171 = vld [vmem:[%s214 + $0x18] sm:$0xff]
      %v1172 = vld [vmem:[%s214 + $0x20] sm:$0xff]
      %v1173 = vld [vmem:[%s214 + $0x28] sm:$0xff]
      %v1174 = vld [vmem:[%s214 + $0x30] sm:$0xff]
      %v1175 = vld [vmem:[%s214 + $0x38] sm:$0xff]
      %v1176 = vld [vmem:[%s214 + $0x40] sm:$0xff]
      %v1177 = vld [vmem:[%s214 + $0x48] sm:$0xff]
      %v1178 = vld [vmem:[%s214 + $0x50] sm:$0xff]
      %v1179 = vld [vmem:[%s214 + $0x58] sm:$0xff]
      %v1180 = vld [vmem:[%s214 + $0x60] sm:$0xff]
      %v1181 = vld [vmem:[%s214 + $0x68] sm:$0xff]
      %v1182 = vld [vmem:[%s214 + $0x70] sm:$0xff]
      %v1183 = vld [vmem:[%s214 + $0x78] sm:$0xff]
      %1185 = vset.pattern.permute.xlu0 0
      %1186 = vperm.xlu0 %1185, %v1168
      %v1187 = vpop.permute.xlu0 %1186
      %1190 = vset.pattern.permute.xlu0 0
      %1191 = vperm.xlu0 %1190, %v1169
      %v1192 = vpop.permute.xlu0 %1191
      %1195 = vset.pattern.permute.xlu0 0
      %1196 = vperm.xlu0 %1195, %v1170
      %v1197 = vpop.permute.xlu0 %1196
      %1200 = vset.pattern.permute.xlu0 0
      %1201 = vperm.xlu0 %1200, %v1171
      %v1202 = vpop.permute.xlu0 %1201
      %1205 = vset.pattern.permute.xlu0 0
      %1206 = vperm.xlu0 %1205, %v1172
      %v1207 = vpop.permute.xlu0 %1206
      %1210 = vset.pattern.permute.xlu0 0
      %1211 = vperm.xlu0 %1210, %v1173
      %v1212 = vpop.permute.xlu0 %1211
      %1215 = vset.pattern.permute.xlu0 0
      %1216 = vperm.xlu0 %1215, %v1174
      %v1217 = vpop.permute.xlu0 %1216
      %1220 = vset.pattern.permute.xlu0 0
      %1221 = vperm.xlu0 %1220, %v1175
      %v1222 = vpop.permute.xlu0 %1221
      %1225 = vset.pattern.permute.xlu0 0
      %1226 = vperm.xlu0 %1225, %v1176
      %v1227 = vpop.permute.xlu0 %1226
      %1230 = vset.pattern.permute.xlu0 0
      %1231 = vperm.xlu0 %1230, %v1177
      %v1232 = vpop.permute.xlu0 %1231
      %1235 = vset.pattern.permute.xlu0 0
      %1236 = vperm.xlu0 %1235, %v1178
      %v1237 = vpop.permute.xlu0 %1236
      %1240 = vset.pattern.permute.xlu0 0
      %1241 = vperm.xlu0 %1240, %v1179
      %v1242 = vpop.permute.xlu0 %1241
      %1245 = vset.pattern.permute.xlu0 0
      %1246 = vperm.xlu0 %1245, %v1180
      %v1247 = vpop.permute.xlu0 %1246
      %1250 = vset.pattern.permute.xlu0 0
      %1251 = vperm.xlu0 %1250, %v1181
      %v1252 = vpop.permute.xlu0 %1251
      %1255 = vset.pattern.permute.xlu0 0
      %1256 = vperm.xlu0 %1255, %v1182
      %v1257 = vpop.permute.xlu0 %1256
      %1260 = vset.pattern.permute.xlu0 0
      %1261 = vperm.xlu0 %1260, %v1183
      %v1262 = vpop.permute.xlu0 %1261
      %v1264 = vadd.f32 %v1056, %v1187
      %v1265 = vadd.f32 %v1057, %v1187
      %v1266 = vadd.f32 %v1058, %v1187
      %v1267 = vadd.f32 %v1059, %v1187
      %v1268 = vadd.f32 %v1060, %v1187
      %v1269 = vadd.f32 %v1061, %v1187
      %v1270 = vadd.f32 %v1062, %v1187
      %v1271 = vadd.f32 %v1063, %v1192
      %v1272 = vadd.f32 %v1064, %v1192
      %v1273 = vadd.f32 %v1065, %v1192
      %v1274 = vadd.f32 %v1066, %v1192
      %v1275 = vadd.f32 %v1067, %v1192
      %v1276 = vadd.f32 %v1068, %v1192
      %v1277 = vadd.f32 %v1069, %v1192
      %v1278 = vadd.f32 %v1070, %v1197
      %v1279 = vadd.f32 %v1071, %v1197
      %v1280 = vadd.f32 %v1072, %v1197
      %v1281 = vadd.f32 %v1073, %v1197
      %v1282 = vadd.f32 %v1074, %v1197
      %v1283 = vadd.f32 %v1075, %v1197
      %v1284 = vadd.f32 %v1076, %v1197
      %v1285 = vadd.f32 %v1077, %v1202
      %v1286 = vadd.f32 %v1078, %v1202
      %v1287 = vadd.f32 %v1079, %v1202
      %v1288 = vadd.f32 %v1080, %v1202
      %v1289 = vadd.f32 %v1081, %v1202
      %v1290 = vadd.f32 %v1082, %v1202
      %v1291 = vadd.f32 %v1083, %v1202
      %v1292 = vadd.f32 %v1084, %v1207
      %v1293 = vadd.f32 %v1085, %v1207
      %v1294 = vadd.f32 %v1086, %v1207
      %v1295 = vadd.f32 %v1087, %v1207
      %v1296 = vadd.f32 %v1088, %v1207
      %v1297 = vadd.f32 %v1089, %v1207
      %v1298 = vadd.f32 %v1090, %v1207
      %v1299 = vadd.f32 %v1091, %v1212
      %v1300 = vadd.f32 %v1092, %v1212
      %v1301 = vadd.f32 %v1093, %v1212
      %v1302 = vadd.f32 %v1094, %v1212
      %v1303 = vadd.f32 %v1095, %v1212
      %v1304 = vadd.f32 %v1096, %v1212
      %v1305 = vadd.f32 %v1097, %v1212
      %v1306 = vadd.f32 %v1098, %v1217
      %v1307 = vadd.f32 %v1099, %v1217
      %v1308 = vadd.f32 %v1100, %v1217
      %v1309 = vadd.f32 %v1101, %v1217
      %v1310 = vadd.f32 %v1102, %v1217
      %v1311 = vadd.f32 %v1103, %v1217
      %v1312 = vadd.f32 %v1104, %v1217
      %v1313 = vadd.f32 %v1105, %v1222
      %v1314 = vadd.f32 %v1106, %v1222
      %v1315 = vadd.f32 %v1107, %v1222
      %v1316 = vadd.f32 %v1108, %v1222
      %v1317 = vadd.f32 %v1109, %v1222
      %v1318 = vadd.f32 %v1110, %v1222
      %v1319 = vadd.f32 %v1111, %v1222
      %v1320 = vadd.f32 %v1112, %v1227
      %v1321 = vadd.f32 %v1113, %v1227
      %v1322 = vadd.f32 %v1114, %v1227
      %v1323 = vadd.f32 %v1115, %v1227
      %v1324 = vadd.f32 %v1116, %v1227
      %v1325 = vadd.f32 %v1117, %v1227
      %v1326 = vadd.f32 %v1118, %v1227
      %v1327 = vadd.f32 %v1119, %v1232
      %v1328 = vadd.f32 %v1120, %v1232
      %v1329 = vadd.f32 %v1121, %v1232
      %v1330 = vadd.f32 %v1122, %v1232
      %v1331 = vadd.f32 %v1123, %v1232
      %v1332 = vadd.f32 %v1124, %v1232
      %v1333 = vadd.f32 %v1125, %v1232
      %v1334 = vadd.f32 %v1126, %v1237
      %v1335 = vadd.f32 %v1127, %v1237
      %v1336 = vadd.f32 %v1128, %v1237
      %v1337 = vadd.f32 %v1129, %v1237
      %v1338 = vadd.f32 %v1130, %v1237
      %v1339 = vadd.f32 %v1131, %v1237
      %v1340 = vadd.f32 %v1132, %v1237
      %v1341 = vadd.f32 %v1133, %v1242
      %v1342 = vadd.f32 %v1134, %v1242
      %v1343 = vadd.f32 %v1135, %v1242
      %v1344 = vadd.f32 %v1136, %v1242
      %v1345 = vadd.f32 %v1137, %v1242
      %v1346 = vadd.f32 %v1138, %v1242
      %v1347 = vadd.f32 %v1139, %v1242
      %v1348 = vadd.f32 %v1140, %v1247
      %v1349 = vadd.f32 %v1141, %v1247
      %v1350 = vadd.f32 %v1142, %v1247
      %v1351 = vadd.f32 %v1143, %v1247
      %v1352 = vadd.f32 %v1144, %v1247
      %v1353 = vadd.f32 %v1145, %v1247
      %v1354 = vadd.f32 %v1146, %v1247
      %v1355 = vadd.f32 %v1147, %v1252
      %v1356 = vadd.f32 %v1148, %v1252
      %v1357 = vadd.f32 %v1149, %v1252
      %v1358 = vadd.f32 %v1150, %v1252
      %v1359 = vadd.f32 %v1151, %v1252
      %v1360 = vadd.f32 %v1152, %v1252
      %v1361 = vadd.f32 %v1153, %v1252
      %v1362 = vadd.f32 %v1154, %v1257
      %v1363 = vadd.f32 %v1155, %v1257
      %v1364 = vadd.f32 %v1156, %v1257
      %v1365 = vadd.f32 %v1157, %v1257
      %v1366 = vadd.f32 %v1158, %v1257
      %v1367 = vadd.f32 %v1159, %v1257
      %v1368 = vadd.f32 %v1160, %v1257
      %v1369 = vadd.f32 %v1161, %v1262
      %v1370 = vadd.f32 %v1162, %v1262
      %v1371 = vadd.f32 %v1163, %v1262
      %v1372 = vadd.f32 %v1164, %v1262
      %v1373 = vadd.f32 %v1165, %v1262
      %v1374 = vadd.f32 %v1166, %v1262
      %v1375 = vadd.f32 %v1167, %v1262
      %v1376 = vmax.f32 %v1264, 0.0
      %v1377 = vmax.f32 %v1265, 0.0
      %v1378 = vmax.f32 %v1266, 0.0
      %v1379 = vmax.f32 %v1267, 0.0
      %v1380 = vmax.f32 %v1268, 0.0
      %v1381 = vmax.f32 %v1269, 0.0
      %v1382 = vmax.f32 %v1270, 0.0
      %v1383 = vmax.f32 %v1271, 0.0
      %v1384 = vmax.f32 %v1272, 0.0
      %v1385 = vmax.f32 %v1273, 0.0
      %v1386 = vmax.f32 %v1274, 0.0
      %v1387 = vmax.f32 %v1275, 0.0
      %v1388 = vmax.f32 %v1276, 0.0
      %v1389 = vmax.f32 %v1277, 0.0
      %v1390 = vmax.f32 %v1278, 0.0
      %v1391 = vmax.f32 %v1279, 0.0
      %v1392 = vmax.f32 %v1280, 0.0
      %v1393 = vmax.f32 %v1281, 0.0
      %v1394 = vmax.f32 %v1282, 0.0
      %v1395 = vmax.f32 %v1283, 0.0
      %v1396 = vmax.f32 %v1284, 0.0
      %v1397 = vmax.f32 %v1285, 0.0
      %v1398 = vmax.f32 %v1286, 0.0
      %v1399 = vmax.f32 %v1287, 0.0
      %v1400 = vmax.f32 %v1288, 0.0
      %v1401 = vmax.f32 %v1289, 0.0
      %v1402 = vmax.f32 %v1290, 0.0
      %v1403 = vmax.f32 %v1291, 0.0
      %v1404 = vmax.f32 %v1292, 0.0
      %v1405 = vmax.f32 %v1293, 0.0
      %v1406 = vmax.f32 %v1294, 0.0
      %v1407 = vmax.f32 %v1295, 0.0
      %v1408 = vmax.f32 %v1296, 0.0
      %v1409 = vmax.f32 %v1297, 0.0
      %v1410 = vmax.f32 %v1298, 0.0
      %v1411 = vmax.f32 %v1299, 0.0
      %v1412 = vmax.f32 %v1300, 0.0
      %v1413 = vmax.f32 %v1301, 0.0
      %v1414 = vmax.f32 %v1302, 0.0
      %v1415 = vmax.f32 %v1303, 0.0
      %v1416 = vmax.f32 %v1304, 0.0
      %v1417 = vmax.f32 %v1305, 0.0
      %v1418 = vmax.f32 %v1306, 0.0
      %v1419 = vmax.f32 %v1307, 0.0
      %v1420 = vmax.f32 %v1308, 0.0
      %v1421 = vmax.f32 %v1309, 0.0
      %v1422 = vmax.f32 %v1310, 0.0
      %v1423 = vmax.f32 %v1311, 0.0
      %v1424 = vmax.f32 %v1312, 0.0
      %v1425 = vmax.f32 %v1313, 0.0
      %v1426 = vmax.f32 %v1314, 0.0
      %v1427 = vmax.f32 %v1315, 0.0
      %v1428 = vmax.f32 %v1316, 0.0
      %v1429 = vmax.f32 %v1317, 0.0
      %v1430 = vmax.f32 %v1318, 0.0
      %v1431 = vmax.f32 %v1319, 0.0
      %v1432 = vmax.f32 %v1320, 0.0
      %v1433 = vmax.f32 %v1321, 0.0
      %v1434 = vmax.f32 %v1322, 0.0
      %v1435 = vmax.f32 %v1323, 0.0
      %v1436 = vmax.f32 %v1324, 0.0
      %v1437 = vmax.f32 %v1325, 0.0
      %v1438 = vmax.f32 %v1326, 0.0
      %v1439 = vmax.f32 %v1327, 0.0
      %v1440 = vmax.f32 %v1328, 0.0
      %v1441 = vmax.f32 %v1329, 0.0
      %v1442 = vmax.f32 %v1330, 0.0
      %v1443 = vmax.f32 %v1331, 0.0
      %v1444 = vmax.f32 %v1332, 0.0
      %v1445 = vmax.f32 %v1333, 0.0
      %v1446 = vmax.f32 %v1334, 0.0
      %v1447 = vmax.f32 %v1335, 0.0
      %v1448 = vmax.f32 %v1336, 0.0
      %v1449 = vmax.f32 %v1337, 0.0
      %v1450 = vmax.f32 %v1338, 0.0
      %v1451 = vmax.f32 %v1339, 0.0
      %v1452 = vmax.f32 %v1340, 0.0
      %v1453 = vmax.f32 %v1341, 0.0
      %v1454 = vmax.f32 %v1342, 0.0
      %v1455 = vmax.f32 %v1343, 0.0
      %v1456 = vmax.f32 %v1344, 0.0
      %v1457 = vmax.f32 %v1345, 0.0
      %v1458 = vmax.f32 %v1346, 0.0
      %v1459 = vmax.f32 %v1347, 0.0
      %v1460 = vmax.f32 %v1348, 0.0
      %v1461 = vmax.f32 %v1349, 0.0
      %v1462 = vmax.f32 %v1350, 0.0
      %v1463 = vmax.f32 %v1351, 0.0
      %v1464 = vmax.f32 %v1352, 0.0
      %v1465 = vmax.f32 %v1353, 0.0
      %v1466 = vmax.f32 %v1354, 0.0
      %v1467 = vmax.f32 %v1355, 0.0
      %v1468 = vmax.f32 %v1356, 0.0
      %v1469 = vmax.f32 %v1357, 0.0
      %v1470 = vmax.f32 %v1358, 0.0
      %v1471 = vmax.f32 %v1359, 0.0
      %v1472 = vmax.f32 %v1360, 0.0
      %v1473 = vmax.f32 %v1361, 0.0
      %v1474 = vmax.f32 %v1362, 0.0
      %v1475 = vmax.f32 %v1363, 0.0
      %v1476 = vmax.f32 %v1364, 0.0
      %v1477 = vmax.f32 %v1365, 0.0
      %v1478 = vmax.f32 %v1366, 0.0
      %v1479 = vmax.f32 %v1367, 0.0
      %v1480 = vmax.f32 %v1368, 0.0
      %v1481 = vmax.f32 %v1369, 0.0
      %v1482 = vmax.f32 %v1370, 0.0
      %v1483 = vmax.f32 %v1371, 0.0
      %v1484 = vmax.f32 %v1372, 0.0
      %v1485 = vmax.f32 %v1373, 0.0
      %v1486 = vmax.f32 %v1374, 0.0
      %v1487 = vmax.f32 %v1375, 0.0
      %1488 = vst [vmem:[%s221] sm:$0xff] %v1376
      %1489 = vst [vmem:[%s221 + $0x8] sm:$0xff] %v1377
      %1490 = vst [vmem:[%s221 + $0x10] sm:$0xff] %v1378
      %1491 = vst [vmem:[%s221 + $0x18] sm:$0xff] %v1379
      %1492 = vst [vmem:[%s221 + $0x20] sm:$0xff] %v1380
      %1493 = vst [vmem:[%s221 + $0x28] sm:$0xff] %v1381
      %1494 = vst.msk [vmem:[%s221 + $0x30] sm:$0xff] %vm340, %v1382
      %1495 = vst [vmem:[%s221 + $0x38] sm:$0xff] %v1383
      %1496 = vst [vmem:[%s221 + $0x40] sm:$0xff] %v1384
      %1497 = vst [vmem:[%s221 + $0x48] sm:$0xff] %v1385
      %1498 = vst [vmem:[%s221 + $0x50] sm:$0xff] %v1386
      %1499 = vst [vmem:[%s221 + $0x58] sm:$0xff] %v1387
      %1500 = vst [vmem:[%s221 + $0x60] sm:$0xff] %v1388
      %1501 = vst.msk [vmem:[%s221 + $0x68] sm:$0xff] %vm340, %v1389
      %1502 = vst [vmem:[%s221 + $0x70] sm:$0xff] %v1390
      %1503 = vst [vmem:[%s221 + $0x78] sm:$0xff] %v1391
      %1504 = vst [vmem:[%s221 + $0x80] sm:$0xff] %v1392
      %1505 = vst [vmem:[%s221 + $0x88] sm:$0xff] %v1393
      %1506 = vst [vmem:[%s221 + $0x90] sm:$0xff] %v1394
      %1507 = vst [vmem:[%s221 + $0x98] sm:$0xff] %v1395
      %1508 = vst.msk [vmem:[%s221 + $0xa0] sm:$0xff] %vm340, %v1396
      %1509 = vst [vmem:[%s221 + $0xa8] sm:$0xff] %v1397
      %1510 = vst [vmem:[%s221 + $0xb0] sm:$0xff] %v1398
      %1511 = vst [vmem:[%s221 + $0xb8] sm:$0xff] %v1399
      %1512 = vst [vmem:[%s221 + $0xc0] sm:$0xff] %v1400
      %1513 = vst [vmem:[%s221 + $0xc8] sm:$0xff] %v1401
      %1514 = vst [vmem:[%s221 + $0xd0] sm:$0xff] %v1402
      %1515 = vst.msk [vmem:[%s221 + $0xd8] sm:$0xff] %vm340, %v1403
      %1516 = vst [vmem:[%s221 + $0xe0] sm:$0xff] %v1404
      %1517 = vst [vmem:[%s221 + $0xe8] sm:$0xff] %v1405
      %1518 = vst [vmem:[%s221 + $0xf0] sm:$0xff] %v1406
      %1519 = vst [vmem:[%s221 + $0xf8] sm:$0xff] %v1407
      %1520 = vst [vmem:[%s221 + $0x100] sm:$0xff] %v1408
      %1521 = vst [vmem:[%s221 + $0x108] sm:$0xff] %v1409
      %1522 = vst.msk [vmem:[%s221 + $0x110] sm:$0xff] %vm340, %v1410
      %1523 = vst [vmem:[%s221 + $0x118] sm:$0xff] %v1411
      %1524 = vst [vmem:[%s221 + $0x120] sm:$0xff] %v1412
      %1525 = vst [vmem:[%s221 + $0x128] sm:$0xff] %v1413
      %1526 = vst [vmem:[%s221 + $0x130] sm:$0xff] %v1414
      %1527 = vst [vmem:[%s221 + $0x138] sm:$0xff] %v1415
      %1528 = vst [vmem:[%s221 + $0x140] sm:$0xff] %v1416
      %1529 = vst.msk [vmem:[%s221 + $0x148] sm:$0xff] %vm340, %v1417
      %1530 = vst [vmem:[%s221 + $0x150] sm:$0xff] %v1418
      %1531 = vst [vmem:[%s221 + $0x158] sm:$0xff] %v1419
      %1532 = vst [vmem:[%s221 + $0x160] sm:$0xff] %v1420
      %1533 = vst [vmem:[%s221 + $0x168] sm:$0xff] %v1421
      %1534 = vst [vmem:[%s221 + $0x170] sm:$0xff] %v1422
      %1535 = vst [vmem:[%s221 + $0x178] sm:$0xff] %v1423
      %1536 = vst.msk [vmem:[%s221 + $0x180] sm:$0xff] %vm340, %v1424
      %1537 = vst [vmem:[%s221 + $0x188] sm:$0xff] %v1425
      %1538 = vst [vmem:[%s221 + $0x190] sm:$0xff] %v1426
      %1539 = vst [vmem:[%s221 + $0x198] sm:$0xff] %v1427
      %1540 = vst [vmem:[%s221 + $0x1a0] sm:$0xff] %v1428
      %1541 = vst [vmem:[%s221 + $0x1a8] sm:$0xff] %v1429
      %1542 = vst [vmem:[%s221 + $0x1b0] sm:$0xff] %v1430
      %1543 = vst.msk [vmem:[%s221 + $0x1b8] sm:$0xff] %vm340, %v1431
      %1544 = vst [vmem:[%s221 + $0x1c0] sm:$0xff] %v1432
      %1545 = vst [vmem:[%s221 + $0x1c8] sm:$0xff] %v1433
      %1546 = vst [vmem:[%s221 + $0x1d0] sm:$0xff] %v1434
      %1547 = vst [vmem:[%s221 + $0x1d8] sm:$0xff] %v1435
      %1548 = vst [vmem:[%s221 + $0x1e0] sm:$0xff] %v1436
      %1549 = vst [vmem:[%s221 + $0x1e8] sm:$0xff] %v1437
      %1550 = vst.msk [vmem:[%s221 + $0x1f0] sm:$0xff] %vm340, %v1438
      %1551 = vst [vmem:[%s221 + $0x1f8] sm:$0xff] %v1439
      %1552 = vst [vmem:[%s221 + $0x200] sm:$0xff] %v1440
      %1553 = vst [vmem:[%s221 + $0x208] sm:$0xff] %v1441
      %1554 = vst [vmem:[%s221 + $0x210] sm:$0xff] %v1442
      %1555 = vst [vmem:[%s221 + $0x218] sm:$0xff] %v1443
      %1556 = vst [vmem:[%s221 + $0x220] sm:$0xff] %v1444
      %1557 = vst.msk [vmem:[%s221 + $0x228] sm:$0xff] %vm340, %v1445
      %1558 = vst [vmem:[%s221 + $0x230] sm:$0xff] %v1446
      %1559 = vst [vmem:[%s221 + $0x238] sm:$0xff] %v1447
      %1560 = vst [vmem:[%s221 + $0x240] sm:$0xff] %v1448
      %1561 = vst [vmem:[%s221 + $0x248] sm:$0xff] %v1449
      %1562 = vst [vmem:[%s221 + $0x250] sm:$0xff] %v1450
      %1563 = vst [vmem:[%s221 + $0x258] sm:$0xff] %v1451
      %1564 = vst.msk [vmem:[%s221 + $0x260] sm:$0xff] %vm340, %v1452
      %1565 = vst [vmem:[%s221 + $0x268] sm:$0xff] %v1453
      %1566 = vst [vmem:[%s221 + $0x270] sm:$0xff] %v1454
      %1567 = vst [vmem:[%s221 + $0x278] sm:$0xff] %v1455
      %1568 = vst [vmem:[%s221 + $0x280] sm:$0xff] %v1456
      %1569 = vst [vmem:[%s221 + $0x288] sm:$0xff] %v1457
      %1570 = vst [vmem:[%s221 + $0x290] sm:$0xff] %v1458
      %1571 = vst.msk [vmem:[%s221 + $0x298] sm:$0xff] %vm340, %v1459
      %1572 = vst [vmem:[%s221 + $0x2a0] sm:$0xff] %v1460
      %1573 = vst [vmem:[%s221 + $0x2a8] sm:$0xff] %v1461
      %1574 = vst [vmem:[%s221 + $0x2b0] sm:$0xff] %v1462
      %1575 = vst [vmem:[%s221 + $0x2b8] sm:$0xff] %v1463
      %1576 = vst [vmem:[%s221 + $0x2c0] sm:$0xff] %v1464
      %1577 = vst [vmem:[%s221 + $0x2c8] sm:$0xff] %v1465
      %1578 = vst.msk [vmem:[%s221 + $0x2d0] sm:$0xff] %vm340, %v1466
      %1579 = vst [vmem:[%s221 + $0x2d8] sm:$0xff] %v1467
      %1580 = vst [vmem:[%s221 + $0x2e0] sm:$0xff] %v1468
      %1581 = vst [vmem:[%s221 + $0x2e8] sm:$0xff] %v1469
      %1582 = vst [vmem:[%s221 + $0x2f0] sm:$0xff] %v1470
      %1583 = vst [vmem:[%s221 + $0x2f8] sm:$0xff] %v1471
      %1584 = vst [vmem:[%s221 + $0x300] sm:$0xff] %v1472
      %1585 = vst.msk [vmem:[%s221 + $0x308] sm:$0xff] %vm340, %v1473
      %1586 = vst [vmem:[%s221 + $0x310] sm:$0xff] %v1474
      %1587 = vst [vmem:[%s221 + $0x318] sm:$0xff] %v1475
      %1588 = vst [vmem:[%s221 + $0x320] sm:$0xff] %v1476
      %1589 = vst [vmem:[%s221 + $0x328] sm:$0xff] %v1477
      %1590 = vst [vmem:[%s221 + $0x330] sm:$0xff] %v1478
      %1591 = vst [vmem:[%s221 + $0x338] sm:$0xff] %v1479
      %1592 = vst.msk [vmem:[%s221 + $0x340] sm:$0xff] %vm340, %v1480
      %1593 = vst [vmem:[%s221 + $0x348] sm:$0xff] %v1481
      %1594 = vst [vmem:[%s221 + $0x350] sm:$0xff] %v1482
      %1595 = vst [vmem:[%s221 + $0x358] sm:$0xff] %v1483
      %1596 = vst [vmem:[%s221 + $0x360] sm:$0xff] %v1484
      %1597 = vst [vmem:[%s221 + $0x368] sm:$0xff] %v1485
      %1598 = vst [vmem:[%s221 + $0x370] sm:$0xff] %v1486
      %1599 = vst.msk [vmem:[%s221 + $0x378] sm:$0xff] %vm340, %v1487
      %s1600 = smul.u32 16, %s14
      %p1601 = scmp.lt.s32.totalorder %s1600, 31
      %s1602 = scalar_select %p1601, %s1600, 31
      %s1603 = smul.addr %s1602, 7
      %s1604 = smul.addr %s1603, 8
      %s1605 = scalar_lea.vmem %s3, %s1604
      // Predicated region
      $region33: #{tpu_custom_call.1} parent=31 // pred_check
        %p1606 = pneg %p110
      $region34: #{tpu_custom_call.1} parent=31 // pred_check_branch
        %1608 = sbr.rel (%p1606) target = $region36
      $region35: #{tpu_custom_call.1} parent=31 // pred_region
        %s1609 = smul.u32 16, %s14
      $region36: #{tpu_custom_call.1} parent=31 // pred_fallthru
        _
    $region32: #{tpu_custom_call.1} parent=5 // pred_fallthru
      _
    %p1610 = scmp.le.s32.totalorder 2, %s9
    // Predicated region
    $region37: #{tpu_custom_call.1} parent=5 // pred_check
      %p1611 = pneg %p1610
    $region38: #{tpu_custom_call.1} parent=5 // pred_check_branch
      %1613 = sbr.rel (%p1611) target = $region40
    $region39: #{tpu_custom_call.1} parent=5 // pred_region
      %s1614 = ssub.s32 %s9, 2
      // Predicated region
      $region41: #{tpu_custom_call.1} parent=39 // pred_check
        %p1615 = pneg %p116
      $region42: #{tpu_custom_call.1} parent=39 // pred_check_branch
        %1617 = sbr.rel (%p1615) target = $region44
      $region43: #{tpu_custom_call.1} parent=39 // pred_region
        %s1618 = smul.u32 16, %s15
        %p1619 = scmp.lt.s32.totalorder %s1618, 31
        %s1620 = scalar_select %p1619, %s1618, 31
        %s1621 = smul.addr %s1620, 7
        %s1622 = smul.addr %s1621, 8
        %s1623 = scalar_lea.vmem %s3, %s1622
      $region44: #{tpu_custom_call.1} parent=39 // pred_fallthru
        _
    $region40: #{tpu_custom_call.1} parent=5 // pred_fallthru
      _
  $region6: #{tpu_custom_call.1} parent=0 // loop_footer
    %s13 = sadd.s32 1, %s9
  $region7: #{tpu_custom_call.1} parent=0 // loop_footer_branch
    %8 = sbr.rel target = $region3
  $region8: #{tpu_custom_call.1} parent=0 // loop_exit
    _

</llo_original>
